<compile_context>
chip_gen: v5e
topology: v5e:2x2
jax: 0.10.0
libtpu: 0.0.40
codegen_flags: <defaults>
</compile_context>

<pallas_src>
import jax
import jax.numpy as jnp
from jax import lax
from jax.experimental import pallas as pl
from jax.experimental.pallas import tpu as pltpu

KSIZE = 7
PAD = 3
PADROWS = 8  # sublane-aligned top padding of the plane scratch


def _spatial_attn_kernel(band_ref, x_ref, o_ref, plane_ref):
    # band_ref : (7, W, W)           f32 VMEM banded conv weights (kx + col pad)
    # x_ref    : (TILE_C, H, W)      VMEM one channel tile of one batch element
    # o_ref    : (H, W)              VMEM output plane (N / out-channel squeezed)
    # plane_ref: (H + 2*PADROWS, W)  f32 VMEM zero-bordered running-max plane
    c = pl.program_id(1)
    num_c = pl.num_programs(1)
    H, W = x_ref.shape[1], x_ref.shape[2]

    # Channel-max of this tile (pure VPU reduction over the leading axis).
    tile_max = jnp.max(x_ref[...], axis=0).astype(jnp.float32)  # (H, W)

    @pl.when(c == 0)
    def _init():
        # One store writes the zero borders (vertical zero padding) and the
        # first tile's max into the sublane-aligned interior.
        zeros_pad = jnp.zeros((PADROWS, W), jnp.float32)
        plane_ref[...] = jnp.concatenate([zeros_pad, tile_max, zeros_pad],
                                         axis=0)

    @pl.when(c > 0)
    def _accum():
        plane_ref[PADROWS:PADROWS + H, :] = jnp.maximum(
            plane_ref[PADROWS:PADROWS + H, :], tile_max)

    @pl.when(c == num_c - 1)
    def _conv():
        # 7x7 cross-correlation as 7 banded MXU matmuls:
        #   out[h, w] = sum_ky plane[PADROWS - PAD + ky + h, :] @ band[ky][:, w]
        r0 = PADROWS - PAD
        acc = jnp.dot(plane_ref[r0:r0 + H, :], band_ref[0],
                      preferred_element_type=jnp.float32,
                      precision=lax.Precision.HIGHEST)
        for ky in range(1, KSIZE):
            acc = acc + jnp.dot(plane_ref[r0 + ky:r0 + ky + H, :], band_ref[ky],
                                preferred_element_type=jnp.float32,
                                precision=lax.Precision.HIGHEST)
        o_ref[...] = acc.astype(o_ref.dtype)


def _make_band(weight, W):
    """(7,7) conv weight -> (7, W, W) banded matrices.

    band[ky, j, w] = weight[ky, j - w + PAD] if 0 <= j - w + PAD < 7 else 0,
    so `row @ band[ky]` applies the kx taps with horizontal zero padding."""
    j = jnp.arange(W)[:, None]
    w = jnp.arange(W)[None, :]
    kx = j - w + PAD
    valid = (kx >= 0) & (kx < KSIZE)
    kx_c = jnp.clip(kx, 0, KSIZE - 1)
    band = jnp.where(valid[None, :, :], weight[:, kx_c], 0.0)
    return band.astype(jnp.float32)


def _pick_tile_c(C, H, W, itemsize, budget_bytes=4 * 1024 * 1024):
    """Largest divisor of C whose (TILE_C, H, W) input tile fits the budget."""
    cap = max(1, budget_bytes // (H * W * itemsize))
    best = 1
    for d in range(1, C + 1):
        if C % d == 0 and d <= cap:
            best = d
    return best


def spatial_attention_no_s(x, weight):
    """x: (N, C, H, W); weight: (7, 7). Returns (N, 1, H, W)."""
    N, C, H, W = x.shape
    band = _make_band(weight, W)

    tile_c = _pick_tile_c(C, H, W, x.dtype.itemsize)
    num_c = C // tile_c

    # VMEM: double-buffered input tile + band + output block + plane scratch.
    vmem_bytes = (2 * tile_c * H * W * x.dtype.itemsize
                  + 2 * KSIZE * W * W * 4
                  + 2 * H * W * x.dtype.itemsize
                  + (H + 2 * PADROWS) * W * 4)
    vmem_limit = int(min(64 * 2**20, max(8 * 2**20, 2 * vmem_bytes)))

    cost = pl.CostEstimate(
        flops=N * H * W * (C + 2 * KSIZE * KSIZE),
        transcendentals=0,
        bytes_accessed=(N * C * H * W * x.dtype.itemsize
                        + N * H * W * x.dtype.itemsize
                        + KSIZE * W * W * 4))

    out = pl.pallas_call(
        _spatial_attn_kernel,
        out_shape=jax.ShapeDtypeStruct((N, 1, H, W), x.dtype),
        grid_spec=pltpu.PrefetchScalarGridSpec(
            num_scalar_prefetch=0,
            grid=(N, num_c),
            in_specs=[
                # banded weights: constant block index -> stays resident in VMEM
                pl.BlockSpec((KSIZE, W, W), lambda b, c: (0, 0, 0)),
                # one (TILE_C, H, W) channel tile per step, batch dim squeezed
                pl.BlockSpec((None, tile_c, H, W), lambda b, c: (b, c, 0, 0)),
            ],
            out_specs=pl.BlockSpec((None, None, H, W), lambda b, c: (b, 0, 0, 0)),
            scratch_shapes=[
                pltpu.VMEM((H + 2 * PADROWS, W), jnp.float32),
            ],
        ),
        compiler_params=pltpu.CompilerParams(
            dimension_semantics=("parallel", "arbitrary"),
            vmem_limit_bytes=vmem_limit),
        cost_estimate=cost,
    )(band, x)
    return out


def reference(x, weight):
    """Exact f32 elementwise reference (channel max + zero-padded 7x7 xcorr)."""
    N, C, H, W = x.shape
    maxed = jnp.max(x, axis=1, keepdims=True)                      # (N,1,H,W)
    p = jnp.pad(maxed, ((0, 0), (0, 0), (PAD, PAD), (PAD, PAD)))
    out = jnp.zeros((N, 1, H, W), x.dtype)
    for ky in range(KSIZE):
        for kx in range(KSIZE):
            out = out + weight[ky, kx] * p[:, :, ky:ky + H, kx:kx + W]
    return out


if __name__ == "__main__":
    key = jax.random.PRNGKey(0)
    kx_key, kw_key = jax.random.split(key)

    N, C, H, W = 2, 4, 16, 16
    x = jax.random.normal(kx_key, (N, C, H, W), dtype=jnp.float32)

    # Deterministic conv weight (kaiming-uniform-ish scale, like nn.Conv2d).
    fan_in = 1 * KSIZE * KSIZE
    bound = 1.0 / (fan_in ** 0.5)
    weight = jax.random.uniform(kw_key, (KSIZE, KSIZE), jnp.float32,
                                minval=-bound, maxval=bound)

    out = spatial_attention_no_s(x, weight)
    out = jax.block_until_ready(out)

    ref = reference(x, weight)
    assert out.shape == (N, 1, H, W)
    assert jnp.allclose(out, ref, atol=1e-4, rtol=1e-4), (
        float(jnp.max(jnp.abs(out - ref))))

    print("KERNEL_OK")
</pallas_src>

<mosaic_0001>
module attributes {stable_mosaic.version = 11 : i64} {
  func.func @_spatial_attn_kernel(%arg0: i32, %arg1: i32, %arg2: memref<7x16x16xf32, #tpu.memory_space<vmem>>, %arg3: memref<1x4x16x16xf32, #tpu.memory_space<vmem>>, %arg4: memref<1x1x16x16xf32, #tpu.memory_space<vmem>>, %arg5: memref<32x16xf32, #tpu.memory_space<vmem>>) attributes {dimension_semantics = [#tpu.dimension_semantics<parallel>, #tpu.dimension_semantics<arbitrary>], iteration_bounds = array<i64: 2, 1>, scalar_prefetch = 0 : i64, scratch_operands = 1 : i64, tpu.core_type = #tpu.core_type<tc>, window_params = [{pipeline_mode = #tpu.pipeline_mode<synchronous>, transform_indices = @transform_0, window_bounds = array<i64: 7, 16, 16>}, {transform_indices = @transform_1, window_bounds = array<i64: 1, 4, 16, 16>}, {transform_indices = @transform_2, window_bounds = array<i64: 1, 1, 16, 16>}]} {
    %c0 = arith.constant 0 : index
    %c0_0 = arith.constant 0 : index
    %c0_1 = arith.constant 0 : index
    %c0_2 = arith.constant 0 : index
    %0 = vector.load %arg3[%c0, %c0_0, %c0_1, %c0_2] : memref<1x4x16x16xf32, #tpu.memory_space<vmem>>, vector<1x4x16x16xf32>
    %1 = vector.shape_cast %0 : vector<1x4x16x16xf32> to vector<4x16x16xf32>
    %cst = arith.constant dense<0xFF800000> : vector<16x16xf32>
    %2 = vector.multi_reduction <maximumf>, %1, %cst [0] : vector<4x16x16xf32> to vector<16x16xf32>
    %c0_i32 = arith.constant 0 : i32
    %3 = arith.cmpi eq, %arg1, %c0_i32 : i32
    %4 = arith.extui %3 : i1 to i32
    %c0_i32_3 = arith.constant 0 : i32
    %5 = arith.cmpi ne, %4, %c0_i32_3 : i32
    scf.if %5 {
      %cst_8 = arith.constant 0.000000e+00 : f32
      %12 = vector.broadcast %cst_8 : f32 to vector<8x16xf32>
      %13 = tpu.concatenate %12, %2, %12 in 0 : vector<8x16xf32>, vector<16x16xf32>, vector<8x16xf32> -> vector<32x16xf32>
      %c0_9 = arith.constant 0 : index
      %c0_10 = arith.constant 0 : index
      %14 = vector.load %arg5[%c0_9, %c0_10] : memref<32x16xf32, #tpu.memory_space<vmem>>, vector<32x16xf32>
      tpu.vector_store %arg5[%c0_9, %c0_10], %13 {strides = array<i32>} : memref<32x16xf32, #tpu.memory_space<vmem>>, vector<32x16xf32>,
    } else {
    }
    %c0_i32_4 = arith.constant 0 : i32
    %6 = arith.cmpi sgt, %arg1, %c0_i32_4 : i32
    %7 = arith.extui %6 : i1 to i32
    %c0_i32_5 = arith.constant 0 : i32
    %8 = arith.cmpi ne, %7, %c0_i32_5 : i32
    scf.if %8 {
      %c8 = arith.constant 8 : index
      %c0_8 = arith.constant 0 : index
      %12 = vector.load %arg5[%c8, %c0_8] : memref<32x16xf32, #tpu.memory_space<vmem>>, vector<16x16xf32>
      %13 = arith.maximumf %12, %2 : vector<16x16xf32>
      %c8_9 = arith.constant 8 : index
      %c0_10 = arith.constant 0 : index
      %14 = vector.load %arg5[%c8_9, %c0_10] : memref<32x16xf32, #tpu.memory_space<vmem>>, vector<16x16xf32>
      tpu.vector_store %arg5[%c8_9, %c0_10], %13 {strides = array<i32>} : memref<32x16xf32, #tpu.memory_space<vmem>>, vector<16x16xf32>,
    } else {
    }
    %c0_i32_6 = arith.constant 0 : i32
    %9 = arith.cmpi eq, %arg1, %c0_i32_6 : i32
    %10 = arith.extui %9 : i1 to i32
    %c0_i32_7 = arith.constant 0 : i32
    %11 = arith.cmpi ne, %10, %c0_i32_7 : i32
    scf.if %11 {
      %c5 = arith.constant 5 : index
      %c0_8 = arith.constant 0 : index
      %12 = vector.load %arg5[%c5, %c0_8] : memref<32x16xf32, #tpu.memory_space<vmem>>, vector<16x16xf32>
      %c0_9 = arith.constant 0 : index
      %c0_10 = arith.constant 0 : index
      %c0_11 = arith.constant 0 : index
      %13 = vector.load %arg2[%c0_9, %c0_10, %c0_11] : memref<7x16x16xf32, #tpu.memory_space<vmem>>, vector<1x16x16xf32>
      %14 = vector.shape_cast %13 : vector<1x16x16xf32> to vector<16x16xf32>
      %cst_12 = arith.constant dense<0.000000e+00> : vector<16x16xf32>
      %15 = tpu.matmul %12, %14, %cst_12 {dimension_numbers = #tpu.dot_dimension_numbers<[1], [0], [0], [1], [0, 0, 1, 1], [], []>, precision = #tpu.contract_precision<fp32>} : vector<16x16xf32>, vector<16x16xf32>, vector<16x16xf32> -> vector<16x16xf32>
      %c6 = arith.constant 6 : index
      %c0_13 = arith.constant 0 : index
      %16 = vector.load %arg5[%c6, %c0_13] : memref<32x16xf32, #tpu.memory_space<vmem>>, vector<16x16xf32>
      %c1 = arith.constant 1 : index
      %c0_14 = arith.constant 0 : index
      %c0_15 = arith.constant 0 : index
      %17 = vector.load %arg2[%c1, %c0_14, %c0_15] : memref<7x16x16xf32, #tpu.memory_space<vmem>>, vector<1x16x16xf32>
      %18 = vector.shape_cast %17 : vector<1x16x16xf32> to vector<16x16xf32>
      %cst_16 = arith.constant dense<0.000000e+00> : vector<16x16xf32>
      %19 = tpu.matmul %16, %18, %cst_16 {dimension_numbers = #tpu.dot_dimension_numbers<[1], [0], [0], [1], [0, 0, 1, 1], [], []>, precision = #tpu.contract_precision<fp32>} : vector<16x16xf32>, vector<16x16xf32>, vector<16x16xf32> -> vector<16x16xf32>
      %20 = arith.addf %15, %19 : vector<16x16xf32>
      %c7 = arith.constant 7 : index
      %c0_17 = arith.constant 0 : index
      %21 = vector.load %arg5[%c7, %c0_17] : memref<32x16xf32, #tpu.memory_space<vmem>>, vector<16x16xf32>
      %c2 = arith.constant 2 : index
      %c0_18 = arith.constant 0 : index
      %c0_19 = arith.constant 0 : index
      %22 = vector.load %arg2[%c2, %c0_18, %c0_19] : memref<7x16x16xf32, #tpu.memory_space<vmem>>, vector<1x16x16xf32>
      %23 = vector.shape_cast %22 : vector<1x16x16xf32> to vector<16x16xf32>
      %cst_20 = arith.constant dense<0.000000e+00> : vector<16x16xf32>
      %24 = tpu.matmul %21, %23, %cst_20 {dimension_numbers = #tpu.dot_dimension_numbers<[1], [0], [0], [1], [0, 0, 1, 1], [], []>, precision = #tpu.contract_precision<fp32>} : vector<16x16xf32>, vector<16x16xf32>, vector<16x16xf32> -> vector<16x16xf32>
      %25 = arith.addf %20, %24 : vector<16x16xf32>
      %c8 = arith.constant 8 : index
      %c0_21 = arith.constant 0 : index
      %26 = vector.load %arg5[%c8, %c0_21] : memref<32x16xf32, #tpu.memory_space<vmem>>, vector<16x16xf32>
      %c3 = arith.constant 3 : index
      %c0_22 = arith.constant 0 : index
      %c0_23 = arith.constant 0 : index
      %27 = vector.load %arg2[%c3, %c0_22, %c0_23] : memref<7x16x16xf32, #tpu.memory_space<vmem>>, vector<1x16x16xf32>
      %28 = vector.shape_cast %27 : vector<1x16x16xf32> to vector<16x16xf32>
      %cst_24 = arith.constant dense<0.000000e+00> : vector<16x16xf32>
      %29 = tpu.matmul %26, %28, %cst_24 {dimension_numbers = #tpu.dot_dimension_numbers<[1], [0], [0], [1], [0, 0, 1, 1], [], []>, precision = #tpu.contract_precision<fp32>} : vector<16x16xf32>, vector<16x16xf32>, vector<16x16xf32> -> vector<16x16xf32>
      %30 = arith.addf %25, %29 : vector<16x16xf32>
      %c9 = arith.constant 9 : index
      %c0_25 = arith.constant 0 : index
      %31 = vector.load %arg5[%c9, %c0_25] : memref<32x16xf32, #tpu.memory_space<vmem>>, vector<16x16xf32>
      %c4 = arith.constant 4 : index
      %c0_26 = arith.constant 0 : index
      %c0_27 = arith.constant 0 : index
      %32 = vector.load %arg2[%c4, %c0_26, %c0_27] : memref<7x16x16xf32, #tpu.memory_space<vmem>>, vector<1x16x16xf32>
      %33 = vector.shape_cast %32 : vector<1x16x16xf32> to vector<16x16xf32>
      %cst_28 = arith.constant dense<0.000000e+00> : vector<16x16xf32>
      %34 = tpu.matmul %31, %33, %cst_28 {dimension_numbers = #tpu.dot_dimension_numbers<[1], [0], [0], [1], [0, 0, 1, 1], [], []>, precision = #tpu.contract_precision<fp32>} : vector<16x16xf32>, vector<16x16xf32>, vector<16x16xf32> -> vector<16x16xf32>
      %35 = arith.addf %30, %34 : vector<16x16xf32>
      %c10 = arith.constant 10 : index
      %c0_29 = arith.constant 0 : index
      %36 = vector.load %arg5[%c10, %c0_29] : memref<32x16xf32, #tpu.memory_space<vmem>>, vector<16x16xf32>
      %c5_30 = arith.constant 5 : index
      %c0_31 = arith.constant 0 : index
      %c0_32 = arith.constant 0 : index
      %37 = vector.load %arg2[%c5_30, %c0_31, %c0_32] : memref<7x16x16xf32, #tpu.memory_space<vmem>>, vector<1x16x16xf32>
      %38 = vector.shape_cast %37 : vector<1x16x16xf32> to vector<16x16xf32>
      %cst_33 = arith.constant dense<0.000000e+00> : vector<16x16xf32>
      %39 = tpu.matmul %36, %38, %cst_33 {dimension_numbers = #tpu.dot_dimension_numbers<[1], [0], [0], [1], [0, 0, 1, 1], [], []>, precision = #tpu.contract_precision<fp32>} : vector<16x16xf32>, vector<16x16xf32>, vector<16x16xf32> -> vector<16x16xf32>
      %40 = arith.addf %35, %39 : vector<16x16xf32>
      %c11 = arith.constant 11 : index
      %c0_34 = arith.constant 0 : index
      %41 = vector.load %arg5[%c11, %c0_34] : memref<32x16xf32, #tpu.memory_space<vmem>>, vector<16x16xf32>
      %c6_35 = arith.constant 6 : index
      %c0_36 = arith.constant 0 : index
      %c0_37 = arith.constant 0 : index
      %42 = vector.load %arg2[%c6_35, %c0_36, %c0_37] : memref<7x16x16xf32, #tpu.memory_space<vmem>>, vector<1x16x16xf32>
      %43 = vector.shape_cast %42 : vector<1x16x16xf32> to vector<16x16xf32>
      %cst_38 = arith.constant dense<0.000000e+00> : vector<16x16xf32>
      %44 = tpu.matmul %41, %43, %cst_38 {dimension_numbers = #tpu.dot_dimension_numbers<[1], [0], [0], [1], [0, 0, 1, 1], [], []>, precision = #tpu.contract_precision<fp32>} : vector<16x16xf32>, vector<16x16xf32>, vector<16x16xf32> -> vector<16x16xf32>
      %45 = arith.addf %40, %44 : vector<16x16xf32>
      %c0_39 = arith.constant 0 : index
      %c0_40 = arith.constant 0 : index
      %c0_41 = arith.constant 0 : index
      %c0_42 = arith.constant 0 : index
      %46 = vector.load %arg4[%c0_39, %c0_40, %c0_41, %c0_42] : memref<1x1x16x16xf32, #tpu.memory_space<vmem>>, vector<1x1x16x16xf32>
      %47 = vector.shape_cast %46 : vector<1x1x16x16xf32> to vector<16x16xf32>
      %48 = vector.shape_cast %45 : vector<16x16xf32> to vector<1x1x16x16xf32>
      tpu.vector_store %arg4[%c0_39, %c0_40, %c0_41, %c0_42], %48 {strides = array<i32>} : memref<1x1x16x16xf32, #tpu.memory_space<vmem>>, vector<1x1x16x16xf32>,
    } else {
    }
    return
  }
  func.func @transform_0(%arg0: i32, %arg1: i32) -> (i32, i32, i32) {
    %c0_i32 = arith.constant 0 : i32
    %c0_i32_0 = arith.constant 0 : i32
    %c0_i32_1 = arith.constant 0 : i32
    %c0_i32_2 = arith.constant 0 : i32
    return %c0_i32, %c0_i32_0, %c0_i32_1 : i32, i32, i32
  }
  func.func @transform_1(%arg0: i32, %arg1: i32) -> (i32, i32, i32, i32) {
    %c0_i32 = arith.constant 0 : i32
    %c0_i32_0 = arith.constant 0 : i32
    %c0_i32_1 = arith.constant 0 : i32
    return %arg0, %arg1, %c0_i32, %c0_i32_0 : i32, i32, i32, i32
  }
  func.func @transform_2(%arg0: i32, %arg1: i32) -> (i32, i32, i32, i32) {
    %c0_i32 = arith.constant 0 : i32
    %c0_i32_0 = arith.constant 0 : i32
    %c0_i32_1 = arith.constant 0 : i32
    %c0_i32_2 = arith.constant 0 : i32
    return %arg0, %c0_i32, %c0_i32_0, %c0_i32_1 : i32, i32, i32, i32
  }
}

</mosaic_0001>

<llo_original>
// kernel: tpu_custom_call.1
$region0: #{tpu_custom_call.1}
  #allocation0 [shape = 'u32[]', space=smem, size = 0x4, offset = 0x4, fixed_abs, tag = 'smem constant byte address 0x4 - core index']
  #allocation1 [shape = 'u32[72,128]{1,0:T(1,128)}', space=vmem, size = 0x9000, scoped, tag = 'internal scratch']
  #allocation2 [shape = 'f32[32,16]{1,0:T(8,128)}', space=vmem, size = 0x4000, scoped, tag = 'scratch operand']
  %s0 = inlined_call_operand.hbm [shape: f32[7,16,16], index: 0, kind: input, shape index: {}]
  %s1 = inlined_call_operand.hbm [shape: f32[2,4,16,16], index: 1, kind: input, shape index: {}]
  %s2 = inlined_call_operand.hbm [shape: f32[2,1,16,16], index: 2, kind: output, shape index: {}]
  %s3 = sld [smem:[#allocation0]]
  $region61: #{tpu_custom_call.1} parent=0
    _
  %s5 = ssub.s32 1, %s3
  %s6 = scalar_select 0, %s5, %s3
  $region1: #{tpu_custom_call.1} parent=0
    #allocation3 [shape = 'u8[57344]{0}', space=vmem, size = 0xe000, scoped, tag = 'input window, operand 0, single buffered']
    #allocation4 [shape = 's32[2]{0}', space=sflag, size = 0x8, scoped, tag = 'scoped memory for tpu_custom_call.1']
    #allocation5 [shape = 's32[2]{0}', space=sflag, size = 0x8, scoped, tag = 'scoped memory for tpu_custom_call.1']
    #allocation6 [shape = 'u8[65536]{0}', space=vmem, size = 0x10000, scoped, tag = 'input window, operand 1']
    #allocation7 [shape = 's32[2]{0}', space=sflag, size = 0x8, scoped, tag = 'scoped memory for tpu_custom_call.1']
    #allocation8 [shape = 'u8[16384]{0}', space=vmem, size = 0x4000, scoped, tag = 'output window, operand 0']
    %7 = vsyncpa [#allocation4], 0
    %8 = vsyncpa [#allocation7], 0
    %s9 = scalar_lea.sflag [#allocation7], 1
    %10 = vsyncpa %s9, 0
    %11 = vsyncpa [#allocation5], 0
    %s12 = scalar_lea.sflag [#allocation5], 1
    %13 = vsyncpa %s12, 0
    loop: start=0, step=1, limit=4
    $region2: #{tpu_custom_call.1} parent=1 // loop_pre_header
      _
    $region3: #{tpu_custom_call.1} parent=1 // loop_header
      %s15 = sphi 0, %s19
      %p16 = scmp.ge.s32.totalorder %s15, 4
      %s22 = sphi 0, %s34
      %s23 = sphi 0, %s30
      %s24 = sphi 0, %s22
      %s25 = sphi 0, %s23
      %s26 = sphi 0, %s24
      %s27 = sphi 0, %s25
      %s35 = sphi 0, %s35
      %s37 = sphi 0, %s35
      %s38 = sphi 0, %s37
      %s52 = sphi 0, %s38
      %s60 = sphi 0, %s62
      %s63 = sphi 0, %s60
      %s64 = sphi 0, %s63
      %s80 = sphi 0, %s64
      %s86 = sphi 0, %s88
      %s89 = sphi 0, %s86
      %s90 = sphi 0, %s89
      %s106 = sphi 0, %s90
    $region4: #{tpu_custom_call.1} parent=1 // loop_header_branch
      %18 = sbr.rel (%p16) target = $region8
    $region5: #{tpu_custom_call.1} parent=1 // loop_body
      %s20 = ssub.s32 %s15, 1
      %s21 = ssub.s32 %s15, 2
      %s28 = sadd.s32 1, %s23
      %p29 = scmp.ge.s32.totalorder %s28, 1
      %s30 = scalar_select %p29, 0, %s28
      %s31 = sadd.s32 1, %s22
      %s32 = scalar_select %p29, %s31, %s22
      %p33 = scmp.ge.s32.totalorder %s32, 2
      %s34 = scalar_select %p33, 0, %s32
      %s36 = sadd.s32 %s35, 1
      %p39 = scmp.eq.s32.totalorder %s15, 1
      %p40 = scmp.ne.s32.totalorder %s35, %s37
      %p41 = scmp.eq.s32.totalorder %s15, 0
      %p42 = por %p40, %p41
      %p43 = scmp.ne.s32.totalorder %s35, %s37
      %p44 = scmp.eq.s32.totalorder %s20, 1
      %p45 = por %p43, %p44
      %p46 = scmp.ne.s32.totalorder %s37, %s38
      %p47 = scmp.eq.s32.totalorder %s20, 0
      %p48 = por %p46, %p47
      %p49 = scmp.ne.s32.totalorder %s37, %s38
      %p50 = scmp.eq.s32.totalorder %s21, 1
      %p51 = por %p49, %p50
      %p53 = scmp.ne.s32.totalorder %s38, %s52
      %p54 = scmp.eq.s32.totalorder %s21, 0
      %p55 = por %p53, %p54
      %s56 = ssub.s32 %s22, %s34
      %s57 = ssub.s32 %s23, %s30
      %s58 = sor.u32 %s56, %s57
      %p59 = scmp.eq.s32.totalorder %s58, 0
      %s61 = sadd.s32 %s60, 1
      %s62 = scalar_select %p59, %s60, %s61
      %p65 = pneg %p59
      %p66 = scmp.eq.s32.totalorder %s15, 1
      %p67 = por %p65, %p66
      %p68 = scmp.ne.s32.totalorder %s60, %s63
      %p69 = scmp.eq.s32.totalorder %s15, 0
      %p70 = por %p68, %p69
      %p71 = scmp.ne.s32.totalorder %s60, %s63
      %p72 = scmp.eq.s32.totalorder %s20, 1
      %p73 = por %p71, %p72
      %p74 = scmp.ne.s32.totalorder %s63, %s64
      %p75 = scmp.eq.s32.totalorder %s20, 0
      %p76 = por %p74, %p75
      %p77 = scmp.ne.s32.totalorder %s63, %s64
      %p78 = scmp.eq.s32.totalorder %s21, 1
      %p79 = por %p77, %p78
      %p81 = scmp.ne.s32.totalorder %s64, %s80
      %p82 = scmp.eq.s32.totalorder %s21, 0
      %p83 = por %p81, %p82
      %s84 = ssub.s32 %s22, %s34
      %p85 = scmp.eq.s32.totalorder %s84, 0
      %s87 = sadd.s32 %s86, 1
      %s88 = scalar_select %p85, %s86, %s87
      %p91 = pneg %p85
      %p92 = scmp.eq.s32.totalorder %s15, 1
      %p93 = por %p91, %p92
      %p94 = scmp.ne.s32.totalorder %s86, %s89
      %p95 = scmp.eq.s32.totalorder %s15, 0
      %p96 = por %p94, %p95
      %p97 = scmp.ne.s32.totalorder %s86, %s89
      %p98 = scmp.eq.s32.totalorder %s20, 1
      %p99 = por %p97, %p98
      %p100 = scmp.ne.s32.totalorder %s89, %s90
      %p101 = scmp.eq.s32.totalorder %s20, 0
      %p102 = por %p100, %p101
      %p103 = scmp.ne.s32.totalorder %s89, %s90
      %p104 = scmp.eq.s32.totalorder %s21, 1
      %p105 = por %p103, %p104
      %p107 = scmp.ne.s32.totalorder %s90, %s106
      %p108 = scmp.eq.s32.totalorder %s21, 0
      %p109 = por %p107, %p108
      %p110 = scmp.le.s32.totalorder 1, %s15
      %p111 = scmp.lt.s32.totalorder %s15, 3
      %p112 = pnand %p110, %p111
      %p113 = pneg %p112
      // Predicated region
      $region9: #{tpu_custom_call.1} parent=5 // pred_check
        _
      $region10: #{tpu_custom_call.1} parent=5 // pred_check_branch
        %115 = sbr.rel (%p112) target = $region12
      $region11: #{tpu_custom_call.1} parent=5 // pred_region
        %s116 = ssub.s32 %s15, 1
        // Predicated region
        $region13: #{tpu_custom_call.1} parent=11 // pred_check
          %p117 = pneg %p48
        $region14: #{tpu_custom_call.1} parent=11 // pred_check_branch
          %119 = sbr.rel (%p117) target = $region16
        $region15: #{tpu_custom_call.1} parent=11 // pred_region
          %121 = vsyncadd [#allocation4], 0
          %s122 = sshll.u32 %s0, 4
          %s123 = int_to_ptr.hbm [resolvable:$true] %s122
          %s124 = sshll.u32 [#allocation3], 4
          %s125 = int_to_ptr.vmem [resolvable:$true] %s124
          %130 = dma.hbm_to_vmem [thread:$0]  %s123, 1792, %s125, [#allocation4], 128, 128, 8
        $region16: #{tpu_custom_call.1} parent=11 // pred_fallthru
          _
      $region12: #{tpu_custom_call.1} parent=5 // pred_fallthru
        _
      %p131 = scmp.lt.s32.totalorder %s15, 2
      // Predicated region
      $region17: #{tpu_custom_call.1} parent=5 // pred_check
        %p132 = pneg %p131
      $region18: #{tpu_custom_call.1} parent=5 // pred_check_branch
        %134 = sbr.rel (%p132) target = $region20
      $region19: #{tpu_custom_call.1} parent=5 // pred_region
        // Predicated region
        $region21: #{tpu_custom_call.1} parent=19 // pred_check
          %p135 = pneg %p70
        $region22: #{tpu_custom_call.1} parent=19 // pred_check_branch
          %137 = sbr.rel (%p135) target = $region24
        $region23: #{tpu_custom_call.1} parent=19 // pred_region
          %s138 = sand.u32 %s60, 1
          %s139 = scalar_lea.sflag [#allocation7], %s138
          %s140 = sand.u32 %s60, 1
          %s141 = smul.addr %s140, 64
          %s142 = scalar_lea.vmem [#allocation6], %s141
          %s143 = smul.u32 4, %s23
          %145 = vsyncadd %s139, 0
          %s146 = smul.addr %s143, 2
          %s147 = smul.addr %s22, 8
          %s148 = sadd.s32 %s146, %s147
          %s149 = smul.addr %s148, 8
          %s150 = scalar_lea.hbm %s1, %s149
          %s151 = sshll.u32 %s150, 4
          %s152 = int_to_ptr.hbm [resolvable:$true] %s151
          %s153 = sshll.u32 %s142, 4
          %s154 = int_to_ptr.vmem [resolvable:$true] %s153
          %159 = dma.hbm_to_vmem [thread:$0]  %s152, 1024, %s154, %s139, 128, 128, 8
        $region24: #{tpu_custom_call.1} parent=19 // pred_fallthru
          _
      $region20: #{tpu_custom_call.1} parent=5 // pred_fallthru
        _
      %p160 = scmp.le.s32.totalorder 1, %s15
      %p161 = scmp.lt.s32.totalorder %s15, 3
      %p162 = pnand %p160, %p161
      %p163 = pneg %p162
      // Predicated region
      $region25: #{tpu_custom_call.1} parent=5 // pred_check
        _
      $region26: #{tpu_custom_call.1} parent=5 // pred_check_branch
        %165 = sbr.rel (%p162) target = $region28
      $region27: #{tpu_custom_call.1} parent=5 // pred_region
        %s166 = ssub.s32 %s15, 1
        // Predicated region
        $region29: #{tpu_custom_call.1} parent=27 // pred_check
          %p167 = pneg %p48
        $region30: #{tpu_custom_call.1} parent=27 // pred_check_branch
          %169 = sbr.rel (%p167) target = $region32
        $region31: #{tpu_custom_call.1} parent=27 // pred_region
          %171 = dma.done [#allocation4], 1792
        $region32: #{tpu_custom_call.1} parent=27 // pred_fallthru
          _
        %s172 = sand.u32 %s63, 1
        %s173 = scalar_lea.sflag [#allocation7], %s172
        %s174 = sand.u32 %s63, 1
        %s175 = smul.addr %s174, 64
        %s176 = scalar_lea.vmem [#allocation6], %s175
        // Predicated region
        $region33: #{tpu_custom_call.1} parent=27 // pred_check
          %p177 = pneg %p76
        $region34: #{tpu_custom_call.1} parent=27 // pred_check_branch
          %179 = sbr.rel (%p177) target = $region36
        $region35: #{tpu_custom_call.1} parent=27 // pred_region
          %181 = dma.done %s173, 1024
        $region36: #{tpu_custom_call.1} parent=27 // pred_fallthru
          _
        %p182 = pneg %p48
        %p183 = pneg %p45
        %s184 = sand.u32 %s63, 1
        %s185 = scalar_lea.sflag [#allocation7], %s184
        %s186 = sand.u32 %s63, 1
        %s187 = smul.addr %s186, 64
        %s188 = scalar_lea.vmem [#allocation6], %s187
        %p189 = pneg %p76
        %p190 = pneg %p73
        %p191 = pneg %p102
        %p192 = pneg %p99
        %s193 = sand.u32 %s89, 1
        %s194 = scalar_lea.sflag [#allocation5], %s193
        %s195 = sand.u32 %s89, 1
        %s196 = smul.addr %s195, 16
        %s197 = scalar_lea.vmem [#allocation8], %s196
        %s198 = smul.u32 4, %s25
        %v199 = vld [vmem:[%s176] sm:$0xff]
        %v200 = vld [vmem:[%s176 + $0x8] sm:$0xff]
        %v201 = vld [vmem:[%s176 + $0x10] sm:$0xff]
        %v202 = vld [vmem:[%s176 + $0x18] sm:$0xff]
        %v203 = vld [vmem:[%s176 + $0x20] sm:$0xff]
        %v204 = vld [vmem:[%s176 + $0x28] sm:$0xff]
        %v205 = vld [vmem:[%s176 + $0x30] sm:$0xff]
        %v206 = vld [vmem:[%s176 + $0x38] sm:$0xff]
        %vm207 = vcmask 130048
        %v208 = vsel %vm207, %v199, -inf
        %v209 = vsel %vm207, %v201, -inf
        %v210 = vsel %vm207, %v203, -inf
        %v211 = vmax.f32 %v208, %v210
        %v212 = vsel %vm207, %v205, -inf
        %v213 = vmax.f32 %v209, %v212
        %v214 = vmax.f32 %v211, %v213
        %v215 = vsel %vm207, %v200, -inf
        %v216 = vsel %vm207, %v202, -inf
        %v217 = vsel %vm207, %v204, -inf
        %v218 = vmax.f32 %v215, %v217
        %v219 = vsel %vm207, %v206, -inf
        %v220 = vmax.f32 %v216, %v219
        %v221 = vmax.f32 %v218, %v220
        %p222 = scmp.eq.s32.totalorder %s25, 0
        // Predicated region
        $region37: #{tpu_custom_call.1} parent=27 // pred_check
          %p223 = pneg %p222
        $region38: #{tpu_custom_call.1} parent=27 // pred_check_branch
          %225 = sbr.rel (%p223) target = $region40
        $region39: #{tpu_custom_call.1} parent=27 // pred_region
          %226 = vst.msk [vmem:[#allocation2] sm:$0xff] %vm207, 0.0
          %227 = vst.msk [vmem:[#allocation2 + $0x8] sm:$0xff] %vm207, %v214
          %228 = vst.msk [vmem:[#allocation2 + $0x10] sm:$0xff] %vm207, %v221
          %229 = vst.msk [vmem:[#allocation2 + $0x18] sm:$0xff] %vm207, 0.0
        $region40: #{tpu_custom_call.1} parent=27 // pred_fallthru
          _
        %p230 = scmp.gt.s32.totalorder %s25, 0
        // Predicated region
        $region41: #{tpu_custom_call.1} parent=27 // pred_check
          %p231 = pneg %p230
        $region42: #{tpu_custom_call.1} parent=27 // pred_check_branch
          %233 = sbr.rel (%p231) target = $region44
        $region43: #{tpu_custom_call.1} parent=27 // pred_region
          %v234 = vld [vmem:[#allocation2 + $0x8] sm:$0xff]
          %v235 = vld [vmem:[#allocation2 + $0x10] sm:$0xff]
          %v236 = vmax.f32 %v234, %v214
          %v237 = vmax.f32 %v235, %v221
          %238 = vst.msk [vmem:[#allocation2 + $0x8] sm:$0xff] %vm207, %v236
          %239 = vst.msk [vmem:[#allocation2 + $0x10] sm:$0xff] %vm207, %v237
        $region44: #{tpu_custom_call.1} parent=27 // pred_fallthru
          _
        // Predicated region
        $region45: #{tpu_custom_call.1} parent=27 // pred_check
          %p240 = pneg %p222
        $region46: #{tpu_custom_call.1} parent=27 // pred_check_branch
          %242 = sbr.rel (%p240) target = $region48
        $region47: #{tpu_custom_call.1} parent=27 // pred_region
          %v243 = vld [vmem:[#allocation2 + $0x5] sm:$0xff]
          %v244 = vld [vmem:[#allocation2 + $0xd] sm:$0xff]
          %v245 = vld [vmem:[#allocation3] sm:$0xff]
          %v246 = vld [vmem:[#allocation3 + $0x8] sm:$0xff]
          %v247 = vld [vmem:[#allocation2 + $0x6] sm:$0xff]
          %v248 = vld [vmem:[#allocation2 + $0xe] sm:$0xff]
          %s249 = scalar_lea.vmem [#allocation3], 16
          %v250 = vld [vmem:[%s249] sm:$0xff]
          %v251 = vld [vmem:[%s249 + $0x8] sm:$0xff]
          %v253 = vsel %vm207, %v247, 0
          %v256 = vsel %vm207, %v248, 0
          %258 = vmatpush.msra.mxu0 0.0
          %259 = vmatpush.msra.mxu0 0.0
          %260 = vmatpush.msra.mxu0 0.0
          %261 = vmatpush.msra.mxu0 0.0
          %262 = vmatpush.msra.mxu0 0.0
          %263 = vmatpush.msra.mxu0 0.0
          %264 = vmatpush.msra.mxu0 0.0
          %265 = vmatpush.msra.mxu0 0.0
          %266 = vmatpush.msra.mxu0 0.0
          %267 = vmatpush.msra.mxu0 0.0
          %268 = vmatpush.msra.mxu0 0.0
          %269 = vmatpush.msra.mxu0 0.0
          %270 = vmatpush.msra.mxu0 0.0
          %271 = vmatpush.msra.mxu0 0.0
          %v272 = vand.u32 %v251, 4294901760
          %273 = vmatpush.msra.mxu0 %v272
          %v274 = vand.u32 %v250, 4294901760
          %275 = vmatpush.msra.mxu0 %v274
          %v276 = vand.u32 %v253, 4294901760
          %v277 = vsub.f32 %v253, %v276
          %v278 = vand.u32 %v277, 4294901760
          %v279 = vsub.f32 %v277, %v278
          %v280 = vand.u32 %v279, 4294901760
          %281 = vmatmul.f32.gmra.mxu0 %v280
          %v282 = vpop.f32.mrf.mxu0
          %v283 = vadd.f32 0.0, %v282
          %v284 = vand.u32 %v256, 4294901760
          %v285 = vsub.f32 %v256, %v284
          %v286 = vand.u32 %v285, 4294901760
          %v287 = vsub.f32 %v285, %v286
          %v288 = vand.u32 %v287, 4294901760
          %289 = vmatmul.f32.gmra.mxu0 %v288
          %v290 = vpop.f32.mrf.mxu0
          %v291 = vadd.f32 0.0, %v290
          %292 = vdwg.mxu0
          %293 = vmatpush.msra.mxu0 0.0
          %294 = vmatpush.msra.mxu0 0.0
          %295 = vmatpush.msra.mxu0 0.0
          %296 = vmatpush.msra.mxu0 0.0
          %297 = vmatpush.msra.mxu0 0.0
          %298 = vmatpush.msra.mxu0 0.0
          %299 = vmatpush.msra.mxu0 0.0
          %300 = vmatpush.msra.mxu0 0.0
          %301 = vmatpush.msra.mxu0 0.0
          %302 = vmatpush.msra.mxu0 0.0
          %303 = vmatpush.msra.mxu0 0.0
          %304 = vmatpush.msra.mxu0 0.0
          %305 = vmatpush.msra.mxu0 0.0
          %306 = vmatpush.msra.mxu0 0.0
          %v307 = vand.u32 %v251, 4294901760
          %v308 = vsub.f32 %v251, %v307
          %v309 = vand.u32 %v308, 4294901760
          %v310 = vsub.f32 %v308, %v309
          %v311 = vand.u32 %v310, 4294901760
          %312 = vmatpush.msra.mxu0 %v311
          %v313 = vand.u32 %v250, 4294901760
          %v314 = vsub.f32 %v250, %v313
          %v315 = vand.u32 %v314, 4294901760
          %v316 = vsub.f32 %v314, %v315
          %v317 = vand.u32 %v316, 4294901760
          %318 = vmatpush.msra.mxu0 %v317
          %v319 = vand.u32 %v253, 4294901760
          %320 = vmatmul.f32.gmra.mxu0 %v319
          %v321 = vpop.f32.mrf.mxu0
          %v322 = vadd.f32 %v283, %v321
          %v323 = vand.u32 %v256, 4294901760
          %324 = vmatmul.f32.gmra.mxu0 %v323
          %v325 = vpop.f32.mrf.mxu0
          %v326 = vadd.f32 %v291, %v325
          %327 = vdwg.mxu0
          %328 = vmatpush.msra.mxu0 0.0
          %329 = vmatpush.msra.mxu0 0.0
          %330 = vmatpush.msra.mxu0 0.0
          %331 = vmatpush.msra.mxu0 0.0
          %332 = vmatpush.msra.mxu0 0.0
          %333 = vmatpush.msra.mxu0 0.0
          %334 = vmatpush.msra.mxu0 0.0
          %335 = vmatpush.msra.mxu0 0.0
          %336 = vmatpush.msra.mxu0 0.0
          %337 = vmatpush.msra.mxu0 0.0
          %338 = vmatpush.msra.mxu0 0.0
          %339 = vmatpush.msra.mxu0 0.0
          %340 = vmatpush.msra.mxu0 0.0
          %341 = vmatpush.msra.mxu0 0.0
          %v342 = vand.u32 %v251, 4294901760
          %v343 = vsub.f32 %v251, %v342
          %344 = vmatpush.msra.mxu0 %v343
          %v345 = vand.u32 %v250, 4294901760
          %v346 = vsub.f32 %v250, %v345
          %347 = vmatpush.msra.mxu0 %v346
          %v348 = vand.u32 %v253, 4294901760
          %v349 = vsub.f32 %v253, %v348
          %350 = vmatmul.f32.gmra.mxu0 %v349
          %v351 = vpop.f32.mrf.mxu0
          %v352 = vadd.f32 %v322, %v351
          %v353 = vand.u32 %v256, 4294901760
          %v354 = vsub.f32 %v256, %v353
          %355 = vmatmul.f32.gmra.mxu0 %v354
          %v356 = vpop.f32.mrf.mxu0
          %v357 = vadd.f32 %v326, %v356
          %358 = vdwg.mxu0
          %359 = vmatpush.msra.mxu0 0.0
          %360 = vmatpush.msra.mxu0 0.0
          %361 = vmatpush.msra.mxu0 0.0
          %362 = vmatpush.msra.mxu0 0.0
          %363 = vmatpush.msra.mxu0 0.0
          %364 = vmatpush.msra.mxu0 0.0
          %365 = vmatpush.msra.mxu0 0.0
          %366 = vmatpush.msra.mxu0 0.0
          %367 = vmatpush.msra.mxu0 0.0
          %368 = vmatpush.msra.mxu0 0.0
          %369 = vmatpush.msra.mxu0 0.0
          %370 = vmatpush.msra.mxu0 0.0
          %371 = vmatpush.msra.mxu0 0.0
          %372 = vmatpush.msra.mxu0 0.0
          %v373 = vand.u32 %v251, 4294901760
          %374 = vmatpush.msra.mxu0 %v373
          %v375 = vand.u32 %v250, 4294901760
          %376 = vmatpush.msra.mxu0 %v375
          %v377 = vand.u32 %v253, 4294901760
          %v378 = vsub.f32 %v253, %v377
          %v379 = vand.u32 %v378, 4294901760
          %380 = vmatmul.f32.gmra.mxu0 %v379
          %v381 = vpop.f32.mrf.mxu0
          %v382 = vadd.f32 %v352, %v381
          %v383 = vand.u32 %v256, 4294901760
          %v384 = vsub.f32 %v256, %v383
          %v385 = vand.u32 %v384, 4294901760
          %386 = vmatmul.f32.gmra.mxu0 %v385
          %v387 = vpop.f32.mrf.mxu0
          %v388 = vadd.f32 %v357, %v387
          %389 = vdwg.mxu0
          %390 = vmatpush.msra.mxu0 0.0
          %391 = vmatpush.msra.mxu0 0.0
          %392 = vmatpush.msra.mxu0 0.0
          %393 = vmatpush.msra.mxu0 0.0
          %394 = vmatpush.msra.mxu0 0.0
          %395 = vmatpush.msra.mxu0 0.0
          %396 = vmatpush.msra.mxu0 0.0
          %397 = vmatpush.msra.mxu0 0.0
          %398 = vmatpush.msra.mxu0 0.0
          %399 = vmatpush.msra.mxu0 0.0
          %400 = vmatpush.msra.mxu0 0.0
          %401 = vmatpush.msra.mxu0 0.0
          %402 = vmatpush.msra.mxu0 0.0
          %403 = vmatpush.msra.mxu0 0.0
          %v404 = vand.u32 %v251, 4294901760
          %v405 = vsub.f32 %v251, %v404
          %v406 = vand.u32 %v405, 4294901760
          %407 = vmatpush.msra.mxu0 %v406
          %v408 = vand.u32 %v250, 4294901760
          %v409 = vsub.f32 %v250, %v408
          %v410 = vand.u32 %v409, 4294901760
          %411 = vmatpush.msra.mxu0 %v410
          %v412 = vand.u32 %v253, 4294901760
          %413 = vmatmul.f32.gmra.mxu0 %v412
          %v414 = vpop.f32.mrf.mxu0
          %v415 = vadd.f32 %v382, %v414
          %v416 = vand.u32 %v256, 4294901760
          %417 = vmatmul.f32.gmra.mxu0 %v416
          %v418 = vpop.f32.mrf.mxu0
          %v419 = vadd.f32 %v388, %v418
          %420 = vdwg.mxu0
          %421 = vmatpush.msra.mxu0 0.0
          %422 = vmatpush.msra.mxu0 0.0
          %423 = vmatpush.msra.mxu0 0.0
          %424 = vmatpush.msra.mxu0 0.0
          %425 = vmatpush.msra.mxu0 0.0
          %426 = vmatpush.msra.mxu0 0.0
          %427 = vmatpush.msra.mxu0 0.0
          %428 = vmatpush.msra.mxu0 0.0
          %429 = vmatpush.msra.mxu0 0.0
          %430 = vmatpush.msra.mxu0 0.0
          %431 = vmatpush.msra.mxu0 0.0
          %432 = vmatpush.msra.mxu0 0.0
          %433 = vmatpush.msra.mxu0 0.0
          %434 = vmatpush.msra.mxu0 0.0
          %v435 = vand.u32 %v251, 4294901760
          %436 = vmatpush.msra.mxu0 %v435
          %v437 = vand.u32 %v250, 4294901760
          %438 = vmatpush.msra.mxu0 %v437
          %v439 = vand.u32 %v253, 4294901760
          %440 = vmatmul.f32.gmra.mxu0 %v439
          %v441 = vpop.f32.mrf.mxu0
          %v442 = vadd.f32 %v415, %v441
          %v443 = vand.u32 %v256, 4294901760
          %444 = vmatmul.f32.gmra.mxu0 %v443
          %v445 = vpop.f32.mrf.mxu0
          %v446 = vadd.f32 %v419, %v445
          %447 = vdwg.mxu0
          %v449 = vsel %vm207, %v243, 0
          %v452 = vsel %vm207, %v244, 0
          %454 = vmatpush.msra.mxu0 0.0
          %455 = vmatpush.msra.mxu0 0.0
          %456 = vmatpush.msra.mxu0 0.0
          %457 = vmatpush.msra.mxu0 0.0
          %458 = vmatpush.msra.mxu0 0.0
          %459 = vmatpush.msra.mxu0 0.0
          %460 = vmatpush.msra.mxu0 0.0
          %461 = vmatpush.msra.mxu0 0.0
          %462 = vmatpush.msra.mxu0 0.0
          %463 = vmatpush.msra.mxu0 0.0
          %464 = vmatpush.msra.mxu0 0.0
          %465 = vmatpush.msra.mxu0 0.0
          %466 = vmatpush.msra.mxu0 0.0
          %467 = vmatpush.msra.mxu0 0.0
          %v468 = vand.u32 %v246, 4294901760
          %469 = vmatpush.msra.mxu0 %v468
          %v470 = vand.u32 %v245, 4294901760
          %471 = vmatpush.msra.mxu0 %v470
          %v472 = vand.u32 %v449, 4294901760
          %v473 = vsub.f32 %v449, %v472
          %v474 = vand.u32 %v473, 4294901760
          %v475 = vsub.f32 %v473, %v474
          %v476 = vand.u32 %v475, 4294901760
          %477 = vmatmul.f32.gmra.mxu0 %v476
          %v478 = vpop.f32.mrf.mxu0
          %v479 = vadd.f32 %v442, %v478
          %v480 = vand.u32 %v452, 4294901760
          %v481 = vsub.f32 %v452, %v480
          %v482 = vand.u32 %v481, 4294901760
          %v483 = vsub.f32 %v481, %v482
          %v484 = vand.u32 %v483, 4294901760
          %485 = vmatmul.f32.gmra.mxu0 %v484
          %v486 = vpop.f32.mrf.mxu0
          %v487 = vadd.f32 %v446, %v486
          %488 = vdwg.mxu0
          %489 = vmatpush.msra.mxu0 0.0
          %490 = vmatpush.msra.mxu0 0.0
          %491 = vmatpush.msra.mxu0 0.0
          %492 = vmatpush.msra.mxu0 0.0
          %493 = vmatpush.msra.mxu0 0.0
          %494 = vmatpush.msra.mxu0 0.0
          %495 = vmatpush.msra.mxu0 0.0
          %496 = vmatpush.msra.mxu0 0.0
          %497 = vmatpush.msra.mxu0 0.0
          %498 = vmatpush.msra.mxu0 0.0
          %499 = vmatpush.msra.mxu0 0.0
          %500 = vmatpush.msra.mxu0 0.0
          %501 = vmatpush.msra.mxu0 0.0
          %502 = vmatpush.msra.mxu0 0.0
          %v503 = vand.u32 %v246, 4294901760
          %v504 = vsub.f32 %v246, %v503
          %v505 = vand.u32 %v504, 4294901760
          %v506 = vsub.f32 %v504, %v505
          %v507 = vand.u32 %v506, 4294901760
          %508 = vmatpush.msra.mxu0 %v507
          %v509 = vand.u32 %v245, 4294901760
          %v510 = vsub.f32 %v245, %v509
          %v511 = vand.u32 %v510, 4294901760
          %v512 = vsub.f32 %v510, %v511
          %v513 = vand.u32 %v512, 4294901760
          %514 = vmatpush.msra.mxu0 %v513
          %v515 = vand.u32 %v449, 4294901760
          %516 = vmatmul.f32.gmra.mxu0 %v515
          %v517 = vpop.f32.mrf.mxu0
          %v518 = vadd.f32 %v479, %v517
          %v519 = vand.u32 %v452, 4294901760
          %520 = vmatmul.f32.gmra.mxu0 %v519
          %v521 = vpop.f32.mrf.mxu0
          %v522 = vadd.f32 %v487, %v521
          %523 = vdwg.mxu0
          %524 = vmatpush.msra.mxu0 0.0
          %525 = vmatpush.msra.mxu0 0.0
          %526 = vmatpush.msra.mxu0 0.0
          %527 = vmatpush.msra.mxu0 0.0
          %528 = vmatpush.msra.mxu0 0.0
          %529 = vmatpush.msra.mxu0 0.0
          %530 = vmatpush.msra.mxu0 0.0
          %531 = vmatpush.msra.mxu0 0.0
          %532 = vmatpush.msra.mxu0 0.0
          %533 = vmatpush.msra.mxu0 0.0
          %534 = vmatpush.msra.mxu0 0.0
          %535 = vmatpush.msra.mxu0 0.0
          %536 = vmatpush.msra.mxu0 0.0
          %537 = vmatpush.msra.mxu0 0.0
          %v538 = vand.u32 %v246, 4294901760
          %v539 = vsub.f32 %v246, %v538
          %540 = vmatpush.msra.mxu0 %v539
          %v541 = vand.u32 %v245, 4294901760
          %v542 = vsub.f32 %v245, %v541
          %543 = vmatpush.msra.mxu0 %v542
          %v544 = vand.u32 %v449, 4294901760
          %v545 = vsub.f32 %v449, %v544
          %546 = vmatmul.f32.gmra.mxu0 %v545
          %v547 = vpop.f32.mrf.mxu0
          %v548 = vadd.f32 %v518, %v547
          %v549 = vand.u32 %v452, 4294901760
          %v550 = vsub.f32 %v452, %v549
          %551 = vmatmul.f32.gmra.mxu0 %v550
          %v552 = vpop.f32.mrf.mxu0
          %v553 = vadd.f32 %v522, %v552
          %554 = vdwg.mxu0
          %555 = vmatpush.msra.mxu0 0.0
          %556 = vmatpush.msra.mxu0 0.0
          %557 = vmatpush.msra.mxu0 0.0
          %558 = vmatpush.msra.mxu0 0.0
          %559 = vmatpush.msra.mxu0 0.0
          %560 = vmatpush.msra.mxu0 0.0
          %561 = vmatpush.msra.mxu0 0.0
          %562 = vmatpush.msra.mxu0 0.0
          %563 = vmatpush.msra.mxu0 0.0
          %564 = vmatpush.msra.mxu0 0.0
          %565 = vmatpush.msra.mxu0 0.0
          %566 = vmatpush.msra.mxu0 0.0
          %567 = vmatpush.msra.mxu0 0.0
          %568 = vmatpush.msra.mxu0 0.0
          %v569 = vand.u32 %v246, 4294901760
          %570 = vmatpush.msra.mxu0 %v569
          %v571 = vand.u32 %v245, 4294901760
          %572 = vmatpush.msra.mxu0 %v571
          %v573 = vand.u32 %v449, 4294901760
          %v574 = vsub.f32 %v449, %v573
          %v575 = vand.u32 %v574, 4294901760
          %576 = vmatmul.f32.gmra.mxu0 %v575
          %v577 = vpop.f32.mrf.mxu0
          %v578 = vadd.f32 %v548, %v577
          %v579 = vand.u32 %v452, 4294901760
          %v580 = vsub.f32 %v452, %v579
          %v581 = vand.u32 %v580, 4294901760
          %582 = vmatmul.f32.gmra.mxu0 %v581
          %v583 = vpop.f32.mrf.mxu0
          %v584 = vadd.f32 %v553, %v583
          %585 = vdwg.mxu0
          %586 = vmatpush.msra.mxu0 0.0
          %587 = vmatpush.msra.mxu0 0.0
          %588 = vmatpush.msra.mxu0 0.0
          %589 = vmatpush.msra.mxu0 0.0
          %590 = vmatpush.msra.mxu0 0.0
          %591 = vmatpush.msra.mxu0 0.0
          %592 = vmatpush.msra.mxu0 0.0
          %593 = vmatpush.msra.mxu0 0.0
          %594 = vmatpush.msra.mxu0 0.0
          %595 = vmatpush.msra.mxu0 0.0
          %596 = vmatpush.msra.mxu0 0.0
          %597 = vmatpush.msra.mxu0 0.0
          %598 = vmatpush.msra.mxu0 0.0
          %599 = vmatpush.msra.mxu0 0.0
          %v600 = vand.u32 %v246, 4294901760
          %v601 = vsub.f32 %v246, %v600
          %v602 = vand.u32 %v601, 4294901760
          %603 = vmatpush.msra.mxu0 %v602
          %v604 = vand.u32 %v245, 4294901760
          %v605 = vsub.f32 %v245, %v604
          %v606 = vand.u32 %v605, 4294901760
          %607 = vmatpush.msra.mxu0 %v606
          %v608 = vand.u32 %v449, 4294901760
          %609 = vmatmul.f32.gmra.mxu0 %v608
          %v610 = vpop.f32.mrf.mxu0
          %v611 = vadd.f32 %v578, %v610
          %v612 = vand.u32 %v452, 4294901760
          %613 = vmatmul.f32.gmra.mxu0 %v612
          %v614 = vpop.f32.mrf.mxu0
          %v615 = vadd.f32 %v584, %v614
          %616 = vdwg.mxu0
          %617 = vmatpush.msra.mxu0 0.0
          %618 = vmatpush.msra.mxu0 0.0
          %619 = vmatpush.msra.mxu0 0.0
          %620 = vmatpush.msra.mxu0 0.0
          %621 = vmatpush.msra.mxu0 0.0
          %622 = vmatpush.msra.mxu0 0.0
          %623 = vmatpush.msra.mxu0 0.0
          %624 = vmatpush.msra.mxu0 0.0
          %625 = vmatpush.msra.mxu0 0.0
          %626 = vmatpush.msra.mxu0 0.0
          %627 = vmatpush.msra.mxu0 0.0
          %628 = vmatpush.msra.mxu0 0.0
          %629 = vmatpush.msra.mxu0 0.0
          %630 = vmatpush.msra.mxu0 0.0
          %v631 = vand.u32 %v246, 4294901760
          %632 = vmatpush.msra.mxu0 %v631
          %v633 = vand.u32 %v245, 4294901760
          %634 = vmatpush.msra.mxu0 %v633
          %v635 = vand.u32 %v449, 4294901760
          %636 = vmatmul.f32.gmra.mxu0 %v635
          %v637 = vpop.f32.mrf.mxu0
          %v638 = vadd.f32 %v611, %v637
          %v639 = vand.u32 %v452, 4294901760
          %640 = vmatmul.f32.gmra.mxu0 %v639
          %v641 = vpop.f32.mrf.mxu0
          %v642 = vadd.f32 %v615, %v641
          %643 = vdwg.mxu0
          %v644 = vld [vmem:[#allocation2 + $0x7] sm:$0xff]
          %v645 = vld [vmem:[#allocation2 + $0xf] sm:$0xff]
          %s646 = scalar_lea.vmem [#allocation3], 32
          %v647 = vld [vmem:[%s646] sm:$0xff]
          %v648 = vld [vmem:[%s646 + $0x8] sm:$0xff]
          %v650 = vsel %vm207, %v644, 0
          %v653 = vsel %vm207, %v645, 0
          %655 = vmatpush.msra.mxu0 0.0
          %656 = vmatpush.msra.mxu0 0.0
          %657 = vmatpush.msra.mxu0 0.0
          %658 = vmatpush.msra.mxu0 0.0
          %659 = vmatpush.msra.mxu0 0.0
          %660 = vmatpush.msra.mxu0 0.0
          %661 = vmatpush.msra.mxu0 0.0
          %662 = vmatpush.msra.mxu0 0.0
          %663 = vmatpush.msra.mxu0 0.0
          %664 = vmatpush.msra.mxu0 0.0
          %665 = vmatpush.msra.mxu0 0.0
          %666 = vmatpush.msra.mxu0 0.0
          %667 = vmatpush.msra.mxu0 0.0
          %668 = vmatpush.msra.mxu0 0.0
          %v669 = vand.u32 %v648, 4294901760
          %670 = vmatpush.msra.mxu0 %v669
          %v671 = vand.u32 %v647, 4294901760
          %672 = vmatpush.msra.mxu0 %v671
          %v673 = vand.u32 %v650, 4294901760
          %v674 = vsub.f32 %v650, %v673
          %v675 = vand.u32 %v674, 4294901760
          %v676 = vsub.f32 %v674, %v675
          %v677 = vand.u32 %v676, 4294901760
          %678 = vmatmul.f32.gmra.mxu0 %v677
          %v679 = vpop.f32.mrf.mxu0
          %v680 = vadd.f32 0.0, %v679
          %v681 = vand.u32 %v653, 4294901760
          %v682 = vsub.f32 %v653, %v681
          %v683 = vand.u32 %v682, 4294901760
          %v684 = vsub.f32 %v682, %v683
          %v685 = vand.u32 %v684, 4294901760
          %686 = vmatmul.f32.gmra.mxu0 %v685
          %v687 = vpop.f32.mrf.mxu0
          %v688 = vadd.f32 0.0, %v687
          %689 = vdwg.mxu0
          %690 = vmatpush.msra.mxu0 0.0
          %691 = vmatpush.msra.mxu0 0.0
          %692 = vmatpush.msra.mxu0 0.0
          %693 = vmatpush.msra.mxu0 0.0
          %694 = vmatpush.msra.mxu0 0.0
          %695 = vmatpush.msra.mxu0 0.0
          %696 = vmatpush.msra.mxu0 0.0
          %697 = vmatpush.msra.mxu0 0.0
          %698 = vmatpush.msra.mxu0 0.0
          %699 = vmatpush.msra.mxu0 0.0
          %700 = vmatpush.msra.mxu0 0.0
          %701 = vmatpush.msra.mxu0 0.0
          %702 = vmatpush.msra.mxu0 0.0
          %703 = vmatpush.msra.mxu0 0.0
          %v704 = vand.u32 %v648, 4294901760
          %v705 = vsub.f32 %v648, %v704
          %v706 = vand.u32 %v705, 4294901760
          %v707 = vsub.f32 %v705, %v706
          %v708 = vand.u32 %v707, 4294901760
          %709 = vmatpush.msra.mxu0 %v708
          %v710 = vand.u32 %v647, 4294901760
          %v711 = vsub.f32 %v647, %v710
          %v712 = vand.u32 %v711, 4294901760
          %v713 = vsub.f32 %v711, %v712
          %v714 = vand.u32 %v713, 4294901760
          %715 = vmatpush.msra.mxu0 %v714
          %v716 = vand.u32 %v650, 4294901760
          %717 = vmatmul.f32.gmra.mxu0 %v716
          %v718 = vpop.f32.mrf.mxu0
          %v719 = vadd.f32 %v680, %v718
          %v720 = vand.u32 %v653, 4294901760
          %721 = vmatmul.f32.gmra.mxu0 %v720
          %v722 = vpop.f32.mrf.mxu0
          %v723 = vadd.f32 %v688, %v722
          %724 = vdwg.mxu0
          %725 = vmatpush.msra.mxu0 0.0
          %726 = vmatpush.msra.mxu0 0.0
          %727 = vmatpush.msra.mxu0 0.0
          %728 = vmatpush.msra.mxu0 0.0
          %729 = vmatpush.msra.mxu0 0.0
          %730 = vmatpush.msra.mxu0 0.0
          %731 = vmatpush.msra.mxu0 0.0
          %732 = vmatpush.msra.mxu0 0.0
          %733 = vmatpush.msra.mxu0 0.0
          %734 = vmatpush.msra.mxu0 0.0
          %735 = vmatpush.msra.mxu0 0.0
          %736 = vmatpush.msra.mxu0 0.0
          %737 = vmatpush.msra.mxu0 0.0
          %738 = vmatpush.msra.mxu0 0.0
          %v739 = vand.u32 %v648, 4294901760
          %v740 = vsub.f32 %v648, %v739
          %741 = vmatpush.msra.mxu0 %v740
          %v742 = vand.u32 %v647, 4294901760
          %v743 = vsub.f32 %v647, %v742
          %744 = vmatpush.msra.mxu0 %v743
          %v745 = vand.u32 %v650, 4294901760
          %v746 = vsub.f32 %v650, %v745
          %747 = vmatmul.f32.gmra.mxu0 %v746
          %v748 = vpop.f32.mrf.mxu0
          %v749 = vadd.f32 %v719, %v748
          %v750 = vand.u32 %v653, 4294901760
          %v751 = vsub.f32 %v653, %v750
          %752 = vmatmul.f32.gmra.mxu0 %v751
          %v753 = vpop.f32.mrf.mxu0
          %v754 = vadd.f32 %v723, %v753
          %755 = vdwg.mxu0
          %756 = vmatpush.msra.mxu0 0.0
          %757 = vmatpush.msra.mxu0 0.0
          %758 = vmatpush.msra.mxu0 0.0
          %759 = vmatpush.msra.mxu0 0.0
          %760 = vmatpush.msra.mxu0 0.0
          %761 = vmatpush.msra.mxu0 0.0
          %762 = vmatpush.msra.mxu0 0.0
          %763 = vmatpush.msra.mxu0 0.0
          %764 = vmatpush.msra.mxu0 0.0
          %765 = vmatpush.msra.mxu0 0.0
          %766 = vmatpush.msra.mxu0 0.0
          %767 = vmatpush.msra.mxu0 0.0
          %768 = vmatpush.msra.mxu0 0.0
          %769 = vmatpush.msra.mxu0 0.0
          %v770 = vand.u32 %v648, 4294901760
          %771 = vmatpush.msra.mxu0 %v770
          %v772 = vand.u32 %v647, 4294901760
          %773 = vmatpush.msra.mxu0 %v772
          %v774 = vand.u32 %v650, 4294901760
          %v775 = vsub.f32 %v650, %v774
          %v776 = vand.u32 %v775, 4294901760
          %777 = vmatmul.f32.gmra.mxu0 %v776
          %v778 = vpop.f32.mrf.mxu0
          %v779 = vadd.f32 %v749, %v778
          %v780 = vand.u32 %v653, 4294901760
          %v781 = vsub.f32 %v653, %v780
          %v782 = vand.u32 %v781, 4294901760
          %783 = vmatmul.f32.gmra.mxu0 %v782
          %v784 = vpop.f32.mrf.mxu0
          %v785 = vadd.f32 %v754, %v784
          %786 = vdwg.mxu0
          %787 = vmatpush.msra.mxu0 0.0
          %788 = vmatpush.msra.mxu0 0.0
          %789 = vmatpush.msra.mxu0 0.0
          %790 = vmatpush.msra.mxu0 0.0
          %791 = vmatpush.msra.mxu0 0.0
          %792 = vmatpush.msra.mxu0 0.0
          %793 = vmatpush.msra.mxu0 0.0
          %794 = vmatpush.msra.mxu0 0.0
          %795 = vmatpush.msra.mxu0 0.0
          %796 = vmatpush.msra.mxu0 0.0
          %797 = vmatpush.msra.mxu0 0.0
          %798 = vmatpush.msra.mxu0 0.0
          %799 = vmatpush.msra.mxu0 0.0
          %800 = vmatpush.msra.mxu0 0.0
          %v801 = vand.u32 %v648, 4294901760
          %v802 = vsub.f32 %v648, %v801
          %v803 = vand.u32 %v802, 4294901760
          %804 = vmatpush.msra.mxu0 %v803
          %v805 = vand.u32 %v647, 4294901760
          %v806 = vsub.f32 %v647, %v805
          %v807 = vand.u32 %v806, 4294901760
          %808 = vmatpush.msra.mxu0 %v807
          %v809 = vand.u32 %v650, 4294901760
          %810 = vmatmul.f32.gmra.mxu0 %v809
          %v811 = vpop.f32.mrf.mxu0
          %v812 = vadd.f32 %v779, %v811
          %v813 = vand.u32 %v653, 4294901760
          %814 = vmatmul.f32.gmra.mxu0 %v813
          %v815 = vpop.f32.mrf.mxu0
          %v816 = vadd.f32 %v785, %v815
          %817 = vdwg.mxu0
          %818 = vmatpush.msra.mxu0 0.0
          %819 = vmatpush.msra.mxu0 0.0
          %820 = vmatpush.msra.mxu0 0.0
          %821 = vmatpush.msra.mxu0 0.0
          %822 = vmatpush.msra.mxu0 0.0
          %823 = vmatpush.msra.mxu0 0.0
          %824 = vmatpush.msra.mxu0 0.0
          %825 = vmatpush.msra.mxu0 0.0
          %826 = vmatpush.msra.mxu0 0.0
          %827 = vmatpush.msra.mxu0 0.0
          %828 = vmatpush.msra.mxu0 0.0
          %829 = vmatpush.msra.mxu0 0.0
          %830 = vmatpush.msra.mxu0 0.0
          %831 = vmatpush.msra.mxu0 0.0
          %v832 = vand.u32 %v648, 4294901760
          %833 = vmatpush.msra.mxu0 %v832
          %v834 = vand.u32 %v647, 4294901760
          %835 = vmatpush.msra.mxu0 %v834
          %v836 = vand.u32 %v650, 4294901760
          %837 = vmatmul.f32.gmra.mxu0 %v836
          %v838 = vpop.f32.mrf.mxu0
          %v839 = vadd.f32 %v812, %v838
          %v840 = vand.u32 %v653, 4294901760
          %841 = vmatmul.f32.gmra.mxu0 %v840
          %v842 = vpop.f32.mrf.mxu0
          %v843 = vadd.f32 %v816, %v842
          %844 = vdwg.mxu0
          %v845 = vadd.f32 %v638, %v839
          %v846 = vadd.f32 %v642, %v843
          %v847 = vld [vmem:[#allocation2 + $0x8] sm:$0xff]
          %v848 = vld [vmem:[#allocation2 + $0x10] sm:$0xff]
          %s849 = scalar_lea.vmem [#allocation3], 48
          %v850 = vld [vmem:[%s849] sm:$0xff]
          %v851 = vld [vmem:[%s849 + $0x8] sm:$0xff]
          %v853 = vsel %vm207, %v847, 0
          %v856 = vsel %vm207, %v848, 0
          %858 = vmatpush.msra.mxu0 0.0
          %859 = vmatpush.msra.mxu0 0.0
          %860 = vmatpush.msra.mxu0 0.0
          %861 = vmatpush.msra.mxu0 0.0
          %862 = vmatpush.msra.mxu0 0.0
          %863 = vmatpush.msra.mxu0 0.0
          %864 = vmatpush.msra.mxu0 0.0
          %865 = vmatpush.msra.mxu0 0.0
          %866 = vmatpush.msra.mxu0 0.0
          %867 = vmatpush.msra.mxu0 0.0
          %868 = vmatpush.msra.mxu0 0.0
          %869 = vmatpush.msra.mxu0 0.0
          %870 = vmatpush.msra.mxu0 0.0
          %871 = vmatpush.msra.mxu0 0.0
          %v872 = vand.u32 %v851, 4294901760
          %873 = vmatpush.msra.mxu0 %v872
          %v874 = vand.u32 %v850, 4294901760
          %875 = vmatpush.msra.mxu0 %v874
          %v876 = vand.u32 %v853, 4294901760
          %v877 = vsub.f32 %v853, %v876
          %v878 = vand.u32 %v877, 4294901760
          %v879 = vsub.f32 %v877, %v878
          %v880 = vand.u32 %v879, 4294901760
          %881 = vmatmul.f32.gmra.mxu0 %v880
          %v882 = vpop.f32.mrf.mxu0
          %v883 = vadd.f32 0.0, %v882
          %v884 = vand.u32 %v856, 4294901760
          %v885 = vsub.f32 %v856, %v884
          %v886 = vand.u32 %v885, 4294901760
          %v887 = vsub.f32 %v885, %v886
          %v888 = vand.u32 %v887, 4294901760
          %889 = vmatmul.f32.gmra.mxu0 %v888
          %v890 = vpop.f32.mrf.mxu0
          %v891 = vadd.f32 0.0, %v890
          %892 = vdwg.mxu0
          %893 = vmatpush.msra.mxu0 0.0
          %894 = vmatpush.msra.mxu0 0.0
          %895 = vmatpush.msra.mxu0 0.0
          %896 = vmatpush.msra.mxu0 0.0
          %897 = vmatpush.msra.mxu0 0.0
          %898 = vmatpush.msra.mxu0 0.0
          %899 = vmatpush.msra.mxu0 0.0
          %900 = vmatpush.msra.mxu0 0.0
          %901 = vmatpush.msra.mxu0 0.0
          %902 = vmatpush.msra.mxu0 0.0
          %903 = vmatpush.msra.mxu0 0.0
          %904 = vmatpush.msra.mxu0 0.0
          %905 = vmatpush.msra.mxu0 0.0
          %906 = vmatpush.msra.mxu0 0.0
          %v907 = vand.u32 %v851, 4294901760
          %v908 = vsub.f32 %v851, %v907
          %v909 = vand.u32 %v908, 4294901760
          %v910 = vsub.f32 %v908, %v909
          %v911 = vand.u32 %v910, 4294901760
          %912 = vmatpush.msra.mxu0 %v911
          %v913 = vand.u32 %v850, 4294901760
          %v914 = vsub.f32 %v850, %v913
          %v915 = vand.u32 %v914, 4294901760
          %v916 = vsub.f32 %v914, %v915
          %v917 = vand.u32 %v916, 4294901760
          %918 = vmatpush.msra.mxu0 %v917
          %v919 = vand.u32 %v853, 4294901760
          %920 = vmatmul.f32.gmra.mxu0 %v919
          %v921 = vpop.f32.mrf.mxu0
          %v922 = vadd.f32 %v883, %v921
          %v923 = vand.u32 %v856, 4294901760
          %924 = vmatmul.f32.gmra.mxu0 %v923
          %v925 = vpop.f32.mrf.mxu0
          %v926 = vadd.f32 %v891, %v925
          %927 = vdwg.mxu0
          %928 = vmatpush.msra.mxu0 0.0
          %929 = vmatpush.msra.mxu0 0.0
          %930 = vmatpush.msra.mxu0 0.0
          %931 = vmatpush.msra.mxu0 0.0
          %932 = vmatpush.msra.mxu0 0.0
          %933 = vmatpush.msra.mxu0 0.0
          %934 = vmatpush.msra.mxu0 0.0
          %935 = vmatpush.msra.mxu0 0.0
          %936 = vmatpush.msra.mxu0 0.0
          %937 = vmatpush.msra.mxu0 0.0
          %938 = vmatpush.msra.mxu0 0.0
          %939 = vmatpush.msra.mxu0 0.0
          %940 = vmatpush.msra.mxu0 0.0
          %941 = vmatpush.msra.mxu0 0.0
          %v942 = vand.u32 %v851, 4294901760
          %v943 = vsub.f32 %v851, %v942
          %944 = vmatpush.msra.mxu0 %v943
          %v945 = vand.u32 %v850, 4294901760
          %v946 = vsub.f32 %v850, %v945
          %947 = vmatpush.msra.mxu0 %v946
          %v948 = vand.u32 %v853, 4294901760
          %v949 = vsub.f32 %v853, %v948
          %950 = vmatmul.f32.gmra.mxu0 %v949
          %v951 = vpop.f32.mrf.mxu0
          %v952 = vadd.f32 %v922, %v951
          %v953 = vand.u32 %v856, 4294901760
          %v954 = vsub.f32 %v856, %v953
          %955 = vmatmul.f32.gmra.mxu0 %v954
          %v956 = vpop.f32.mrf.mxu0
          %v957 = vadd.f32 %v926, %v956
          %958 = vdwg.mxu0
          %959 = vmatpush.msra.mxu0 0.0
          %960 = vmatpush.msra.mxu0 0.0
          %961 = vmatpush.msra.mxu0 0.0
          %962 = vmatpush.msra.mxu0 0.0
          %963 = vmatpush.msra.mxu0 0.0
          %964 = vmatpush.msra.mxu0 0.0
          %965 = vmatpush.msra.mxu0 0.0
          %966 = vmatpush.msra.mxu0 0.0
          %967 = vmatpush.msra.mxu0 0.0
          %968 = vmatpush.msra.mxu0 0.0
          %969 = vmatpush.msra.mxu0 0.0
          %970 = vmatpush.msra.mxu0 0.0
          %971 = vmatpush.msra.mxu0 0.0
          %972 = vmatpush.msra.mxu0 0.0
          %v973 = vand.u32 %v851, 4294901760
          %974 = vmatpush.msra.mxu0 %v973
          %v975 = vand.u32 %v850, 4294901760
          %976 = vmatpush.msra.mxu0 %v975
          %v977 = vand.u32 %v853, 4294901760
          %v978 = vsub.f32 %v853, %v977
          %v979 = vand.u32 %v978, 4294901760
          %980 = vmatmul.f32.gmra.mxu0 %v979
          %v981 = vpop.f32.mrf.mxu0
          %v982 = vadd.f32 %v952, %v981
          %v983 = vand.u32 %v856, 4294901760
          %v984 = vsub.f32 %v856, %v983
          %v985 = vand.u32 %v984, 4294901760
          %986 = vmatmul.f32.gmra.mxu0 %v985
          %v987 = vpop.f32.mrf.mxu0
          %v988 = vadd.f32 %v957, %v987
          %989 = vdwg.mxu0
          %990 = vmatpush.msra.mxu0 0.0
          %991 = vmatpush.msra.mxu0 0.0
          %992 = vmatpush.msra.mxu0 0.0
          %993 = vmatpush.msra.mxu0 0.0
          %994 = vmatpush.msra.mxu0 0.0
          %995 = vmatpush.msra.mxu0 0.0
          %996 = vmatpush.msra.mxu0 0.0
          %997 = vmatpush.msra.mxu0 0.0
          %998 = vmatpush.msra.mxu0 0.0
          %999 = vmatpush.msra.mxu0 0.0
          %1000 = vmatpush.msra.mxu0 0.0
          %1001 = vmatpush.msra.mxu0 0.0
          %1002 = vmatpush.msra.mxu0 0.0
          %1003 = vmatpush.msra.mxu0 0.0
          %v1004 = vand.u32 %v851, 4294901760
          %v1005 = vsub.f32 %v851, %v1004
          %v1006 = vand.u32 %v1005, 4294901760
          %1007 = vmatpush.msra.mxu0 %v1006
          %v1008 = vand.u32 %v850, 4294901760
          %v1009 = vsub.f32 %v850, %v1008
          %v1010 = vand.u32 %v1009, 4294901760
          %1011 = vmatpush.msra.mxu0 %v1010
          %v1012 = vand.u32 %v853, 4294901760
          %1013 = vmatmul.f32.gmra.mxu0 %v1012
          %v1014 = vpop.f32.mrf.mxu0
          %v1015 = vadd.f32 %v982, %v1014
          %v1016 = vand.u32 %v856, 4294901760
          %1017 = vmatmul.f32.gmra.mxu0 %v1016
          %v1018 = vpop.f32.mrf.mxu0
          %v1019 = vadd.f32 %v988, %v1018
          %1020 = vdwg.mxu0
          %1021 = vmatpush.msra.mxu0 0.0
          %1022 = vmatpush.msra.mxu0 0.0
          %1023 = vmatpush.msra.mxu0 0.0
          %1024 = vmatpush.msra.mxu0 0.0
          %1025 = vmatpush.msra.mxu0 0.0
          %1026 = vmatpush.msra.mxu0 0.0
          %1027 = vmatpush.msra.mxu0 0.0
          %1028 = vmatpush.msra.mxu0 0.0
          %1029 = vmatpush.msra.mxu0 0.0
          %1030 = vmatpush.msra.mxu0 0.0
          %1031 = vmatpush.msra.mxu0 0.0
          %1032 = vmatpush.msra.mxu0 0.0
          %1033 = vmatpush.msra.mxu0 0.0
          %1034 = vmatpush.msra.mxu0 0.0
          %v1035 = vand.u32 %v851, 4294901760
          %1036 = vmatpush.msra.mxu0 %v1035
          %v1037 = vand.u32 %v850, 4294901760
          %1038 = vmatpush.msra.mxu0 %v1037
          %v1039 = vand.u32 %v853, 4294901760
          %1040 = vmatmul.f32.gmra.mxu0 %v1039
          %v1041 = vpop.f32.mrf.mxu0
          %v1042 = vadd.f32 %v1015, %v1041
          %v1043 = vand.u32 %v856, 4294901760
          %1044 = vmatmul.f32.gmra.mxu0 %v1043
          %v1045 = vpop.f32.mrf.mxu0
          %v1046 = vadd.f32 %v1019, %v1045
          %1047 = vdwg.mxu0
          %v1048 = vadd.f32 %v845, %v1042
          %v1049 = vadd.f32 %v846, %v1046
          %v1050 = vld [vmem:[#allocation2 + $0x9] sm:$0xff]
          %v1051 = vld [vmem:[#allocation2 + $0x11] sm:$0xff]
          %s1052 = scalar_lea.vmem [#allocation3], 64
          %v1053 = vld [vmem:[%s1052] sm:$0xff]
          %v1054 = vld [vmem:[%s1052 + $0x8] sm:$0xff]
          %v1056 = vsel %vm207, %v1050, 0
          %v1059 = vsel %vm207, %v1051, 0
          %1061 = vmatpush.msra.mxu0 0.0
          %1062 = vmatpush.msra.mxu0 0.0
          %1063 = vmatpush.msra.mxu0 0.0
          %1064 = vmatpush.msra.mxu0 0.0
          %1065 = vmatpush.msra.mxu0 0.0
          %1066 = vmatpush.msra.mxu0 0.0
          %1067 = vmatpush.msra.mxu0 0.0
          %1068 = vmatpush.msra.mxu0 0.0
          %1069 = vmatpush.msra.mxu0 0.0
          %1070 = vmatpush.msra.mxu0 0.0
          %1071 = vmatpush.msra.mxu0 0.0
          %1072 = vmatpush.msra.mxu0 0.0
          %1073 = vmatpush.msra.mxu0 0.0
          %1074 = vmatpush.msra.mxu0 0.0
          %v1075 = vand.u32 %v1054, 4294901760
          %1076 = vmatpush.msra.mxu0 %v1075
          %v1077 = vand.u32 %v1053, 4294901760
          %1078 = vmatpush.msra.mxu0 %v1077
          %v1079 = vand.u32 %v1056, 4294901760
          %v1080 = vsub.f32 %v1056, %v1079
          %v1081 = vand.u32 %v1080, 4294901760
          %v1082 = vsub.f32 %v1080, %v1081
          %v1083 = vand.u32 %v1082, 4294901760
          %1084 = vmatmul.f32.gmra.mxu0 %v1083
          %v1085 = vpop.f32.mrf.mxu0
          %v1086 = vadd.f32 0.0, %v1085
          %v1087 = vand.u32 %v1059, 4294901760
          %v1088 = vsub.f32 %v1059, %v1087
          %v1089 = vand.u32 %v1088, 4294901760
          %v1090 = vsub.f32 %v1088, %v1089
          %v1091 = vand.u32 %v1090, 4294901760
          %1092 = vmatmul.f32.gmra.mxu0 %v1091
          %v1093 = vpop.f32.mrf.mxu0
          %v1094 = vadd.f32 0.0, %v1093
          %1095 = vdwg.mxu0
          %1096 = vmatpush.msra.mxu0 0.0
          %1097 = vmatpush.msra.mxu0 0.0
          %1098 = vmatpush.msra.mxu0 0.0
          %1099 = vmatpush.msra.mxu0 0.0
          %1100 = vmatpush.msra.mxu0 0.0
          %1101 = vmatpush.msra.mxu0 0.0
          %1102 = vmatpush.msra.mxu0 0.0
          %1103 = vmatpush.msra.mxu0 0.0
          %1104 = vmatpush.msra.mxu0 0.0
          %1105 = vmatpush.msra.mxu0 0.0
          %1106 = vmatpush.msra.mxu0 0.0
          %1107 = vmatpush.msra.mxu0 0.0
          %1108 = vmatpush.msra.mxu0 0.0
          %1109 = vmatpush.msra.mxu0 0.0
          %v1110 = vand.u32 %v1054, 4294901760
          %v1111 = vsub.f32 %v1054, %v1110
          %v1112 = vand.u32 %v1111, 4294901760
          %v1113 = vsub.f32 %v1111, %v1112
          %v1114 = vand.u32 %v1113, 4294901760
          %1115 = vmatpush.msra.mxu0 %v1114
          %v1116 = vand.u32 %v1053, 4294901760
          %v1117 = vsub.f32 %v1053, %v1116
          %v1118 = vand.u32 %v1117, 4294901760
          %v1119 = vsub.f32 %v1117, %v1118
          %v1120 = vand.u32 %v1119, 4294901760
          %1121 = vmatpush.msra.mxu0 %v1120
          %v1122 = vand.u32 %v1056, 4294901760
          %1123 = vmatmul.f32.gmra.mxu0 %v1122
          %v1124 = vpop.f32.mrf.mxu0
          %v1125 = vadd.f32 %v1086, %v1124
          %v1126 = vand.u32 %v1059, 4294901760
          %1127 = vmatmul.f32.gmra.mxu0 %v1126
          %v1128 = vpop.f32.mrf.mxu0
          %v1129 = vadd.f32 %v1094, %v1128
          %1130 = vdwg.mxu0
          %1131 = vmatpush.msra.mxu0 0.0
          %1132 = vmatpush.msra.mxu0 0.0
          %1133 = vmatpush.msra.mxu0 0.0
          %1134 = vmatpush.msra.mxu0 0.0
          %1135 = vmatpush.msra.mxu0 0.0
          %1136 = vmatpush.msra.mxu0 0.0
          %1137 = vmatpush.msra.mxu0 0.0
          %1138 = vmatpush.msra.mxu0 0.0
          %1139 = vmatpush.msra.mxu0 0.0
          %1140 = vmatpush.msra.mxu0 0.0
          %1141 = vmatpush.msra.mxu0 0.0
          %1142 = vmatpush.msra.mxu0 0.0
          %1143 = vmatpush.msra.mxu0 0.0
          %1144 = vmatpush.msra.mxu0 0.0
          %v1145 = vand.u32 %v1054, 4294901760
          %v1146 = vsub.f32 %v1054, %v1145
          %1147 = vmatpush.msra.mxu0 %v1146
          %v1148 = vand.u32 %v1053, 4294901760
          %v1149 = vsub.f32 %v1053, %v1148
          %1150 = vmatpush.msra.mxu0 %v1149
          %v1151 = vand.u32 %v1056, 4294901760
          %v1152 = vsub.f32 %v1056, %v1151
          %1153 = vmatmul.f32.gmra.mxu0 %v1152
          %v1154 = vpop.f32.mrf.mxu0
          %v1155 = vadd.f32 %v1125, %v1154
          %v1156 = vand.u32 %v1059, 4294901760
          %v1157 = vsub.f32 %v1059, %v1156
          %1158 = vmatmul.f32.gmra.mxu0 %v1157
          %v1159 = vpop.f32.mrf.mxu0
          %v1160 = vadd.f32 %v1129, %v1159
          %1161 = vdwg.mxu0
          %1162 = vmatpush.msra.mxu0 0.0
          %1163 = vmatpush.msra.mxu0 0.0
          %1164 = vmatpush.msra.mxu0 0.0
          %1165 = vmatpush.msra.mxu0 0.0
          %1166 = vmatpush.msra.mxu0 0.0
          %1167 = vmatpush.msra.mxu0 0.0
          %1168 = vmatpush.msra.mxu0 0.0
          %1169 = vmatpush.msra.mxu0 0.0
          %1170 = vmatpush.msra.mxu0 0.0
          %1171 = vmatpush.msra.mxu0 0.0
          %1172 = vmatpush.msra.mxu0 0.0
          %1173 = vmatpush.msra.mxu0 0.0
          %1174 = vmatpush.msra.mxu0 0.0
          %1175 = vmatpush.msra.mxu0 0.0
          %v1176 = vand.u32 %v1054, 4294901760
          %1177 = vmatpush.msra.mxu0 %v1176
          %v1178 = vand.u32 %v1053, 4294901760
          %1179 = vmatpush.msra.mxu0 %v1178
          %v1180 = vand.u32 %v1056, 4294901760
          %v1181 = vsub.f32 %v1056, %v1180
          %v1182 = vand.u32 %v1181, 4294901760
          %1183 = vmatmul.f32.gmra.mxu0 %v1182
          %v1184 = vpop.f32.mrf.mxu0
          %v1185 = vadd.f32 %v1155, %v1184
          %v1186 = vand.u32 %v1059, 4294901760
          %v1187 = vsub.f32 %v1059, %v1186
          %v1188 = vand.u32 %v1187, 4294901760
          %1189 = vmatmul.f32.gmra.mxu0 %v1188
          %v1190 = vpop.f32.mrf.mxu0
          %v1191 = vadd.f32 %v1160, %v1190
          %1192 = vdwg.mxu0
          %1193 = vmatpush.msra.mxu0 0.0
          %1194 = vmatpush.msra.mxu0 0.0
          %1195 = vmatpush.msra.mxu0 0.0
          %1196 = vmatpush.msra.mxu0 0.0
          %1197 = vmatpush.msra.mxu0 0.0
          %1198 = vmatpush.msra.mxu0 0.0
          %1199 = vmatpush.msra.mxu0 0.0
          %1200 = vmatpush.msra.mxu0 0.0
          %1201 = vmatpush.msra.mxu0 0.0
          %1202 = vmatpush.msra.mxu0 0.0
          %1203 = vmatpush.msra.mxu0 0.0
          %1204 = vmatpush.msra.mxu0 0.0
          %1205 = vmatpush.msra.mxu0 0.0
          %1206 = vmatpush.msra.mxu0 0.0
          %v1207 = vand.u32 %v1054, 4294901760
          %v1208 = vsub.f32 %v1054, %v1207
          %v1209 = vand.u32 %v1208, 4294901760
          %1210 = vmatpush.msra.mxu0 %v1209
          %v1211 = vand.u32 %v1053, 4294901760
          %v1212 = vsub.f32 %v1053, %v1211
          %v1213 = vand.u32 %v1212, 4294901760
          %1214 = vmatpush.msra.mxu0 %v1213
          %v1215 = vand.u32 %v1056, 4294901760
          %1216 = vmatmul.f32.gmra.mxu0 %v1215
          %v1217 = vpop.f32.mrf.mxu0
          %v1218 = vadd.f32 %v1185, %v1217
          %v1219 = vand.u32 %v1059, 4294901760
          %1220 = vmatmul.f32.gmra.mxu0 %v1219
          %v1221 = vpop.f32.mrf.mxu0
          %v1222 = vadd.f32 %v1191, %v1221
          %1223 = vdwg.mxu0
          %1224 = vmatpush.msra.mxu0 0.0
          %1225 = vmatpush.msra.mxu0 0.0
          %1226 = vmatpush.msra.mxu0 0.0
          %1227 = vmatpush.msra.mxu0 0.0
          %1228 = vmatpush.msra.mxu0 0.0
          %1229 = vmatpush.msra.mxu0 0.0
          %1230 = vmatpush.msra.mxu0 0.0
          %1231 = vmatpush.msra.mxu0 0.0
          %1232 = vmatpush.msra.mxu0 0.0
          %1233 = vmatpush.msra.mxu0 0.0
          %1234 = vmatpush.msra.mxu0 0.0
          %1235 = vmatpush.msra.mxu0 0.0
          %1236 = vmatpush.msra.mxu0 0.0
          %1237 = vmatpush.msra.mxu0 0.0
          %v1238 = vand.u32 %v1054, 4294901760
          %1239 = vmatpush.msra.mxu0 %v1238
          %v1240 = vand.u32 %v1053, 4294901760
          %1241 = vmatpush.msra.mxu0 %v1240
          %v1242 = vand.u32 %v1056, 4294901760
          %1243 = vmatmul.f32.gmra.mxu0 %v1242
          %v1244 = vpop.f32.mrf.mxu0
          %v1245 = vadd.f32 %v1218, %v1244
          %v1246 = vand.u32 %v1059, 4294901760
          %1247 = vmatmul.f32.gmra.mxu0 %v1246
          %v1248 = vpop.f32.mrf.mxu0
          %v1249 = vadd.f32 %v1222, %v1248
          %1250 = vdwg.mxu0
          %v1251 = vadd.f32 %v1048, %v1245
          %v1252 = vadd.f32 %v1049, %v1249
          %v1253 = vld [vmem:[#allocation2 + $0xa] sm:$0xff]
          %v1254 = vld [vmem:[#allocation2 + $0x12] sm:$0xff]
          %s1255 = scalar_lea.vmem [#allocation3], 80
          %v1256 = vld [vmem:[%s1255] sm:$0xff]
          %v1257 = vld [vmem:[%s1255 + $0x8] sm:$0xff]
          %v1259 = vsel %vm207, %v1253, 0
          %v1262 = vsel %vm207, %v1254, 0
          %1264 = vmatpush.msra.mxu0 0.0
          %1265 = vmatpush.msra.mxu0 0.0
          %1266 = vmatpush.msra.mxu0 0.0
          %1267 = vmatpush.msra.mxu0 0.0
          %1268 = vmatpush.msra.mxu0 0.0
          %1269 = vmatpush.msra.mxu0 0.0
          %1270 = vmatpush.msra.mxu0 0.0
          %1271 = vmatpush.msra.mxu0 0.0
          %1272 = vmatpush.msra.mxu0 0.0
          %1273 = vmatpush.msra.mxu0 0.0
          %1274 = vmatpush.msra.mxu0 0.0
          %1275 = vmatpush.msra.mxu0 0.0
          %1276 = vmatpush.msra.mxu0 0.0
          %1277 = vmatpush.msra.mxu0 0.0
          %v1278 = vand.u32 %v1257, 4294901760
          %1279 = vmatpush.msra.mxu0 %v1278
          %v1280 = vand.u32 %v1256, 4294901760
          %1281 = vmatpush.msra.mxu0 %v1280
          %v1282 = vand.u32 %v1259, 4294901760
          %v1283 = vsub.f32 %v1259, %v1282
          %v1284 = vand.u32 %v1283, 4294901760
          %v1285 = vsub.f32 %v1283, %v1284
          %v1286 = vand.u32 %v1285, 4294901760
          %1287 = vmatmul.f32.gmra.mxu0 %v1286
          %v1288 = vpop.f32.mrf.mxu0
          %v1289 = vadd.f32 0.0, %v1288
          %v1290 = vand.u32 %v1262, 4294901760
          %v1291 = vsub.f32 %v1262, %v1290
          %v1292 = vand.u32 %v1291, 4294901760
          %v1293 = vsub.f32 %v1291, %v1292
          %v1294 = vand.u32 %v1293, 4294901760
          %1295 = vmatmul.f32.gmra.mxu0 %v1294
          %v1296 = vpop.f32.mrf.mxu0
          %v1297 = vadd.f32 0.0, %v1296
          %1298 = vdwg.mxu0
          %1299 = vmatpush.msra.mxu0 0.0
          %1300 = vmatpush.msra.mxu0 0.0
          %1301 = vmatpush.msra.mxu0 0.0
          %1302 = vmatpush.msra.mxu0 0.0
          %1303 = vmatpush.msra.mxu0 0.0
          %1304 = vmatpush.msra.mxu0 0.0
          %1305 = vmatpush.msra.mxu0 0.0
          %1306 = vmatpush.msra.mxu0 0.0
          %1307 = vmatpush.msra.mxu0 0.0
          %1308 = vmatpush.msra.mxu0 0.0
          %1309 = vmatpush.msra.mxu0 0.0
          %1310 = vmatpush.msra.mxu0 0.0
          %1311 = vmatpush.msra.mxu0 0.0
          %1312 = vmatpush.msra.mxu0 0.0
          %v1313 = vand.u32 %v1257, 4294901760
          %v1314 = vsub.f32 %v1257, %v1313
          %v1315 = vand.u32 %v1314, 4294901760
          %v1316 = vsub.f32 %v1314, %v1315
          %v1317 = vand.u32 %v1316, 4294901760
          %1318 = vmatpush.msra.mxu0 %v1317
          %v1319 = vand.u32 %v1256, 4294901760
          %v1320 = vsub.f32 %v1256, %v1319
          %v1321 = vand.u32 %v1320, 4294901760
          %v1322 = vsub.f32 %v1320, %v1321
          %v1323 = vand.u32 %v1322, 4294901760
          %1324 = vmatpush.msra.mxu0 %v1323
          %v1325 = vand.u32 %v1259, 4294901760
          %1326 = vmatmul.f32.gmra.mxu0 %v1325
          %v1327 = vpop.f32.mrf.mxu0
          %v1328 = vadd.f32 %v1289, %v1327
          %v1329 = vand.u32 %v1262, 4294901760
          %1330 = vmatmul.f32.gmra.mxu0 %v1329
          %v1331 = vpop.f32.mrf.mxu0
          %v1332 = vadd.f32 %v1297, %v1331
          %1333 = vdwg.mxu0
          %1334 = vmatpush.msra.mxu0 0.0
          %1335 = vmatpush.msra.mxu0 0.0
          %1336 = vmatpush.msra.mxu0 0.0
          %1337 = vmatpush.msra.mxu0 0.0
          %1338 = vmatpush.msra.mxu0 0.0
          %1339 = vmatpush.msra.mxu0 0.0
          %1340 = vmatpush.msra.mxu0 0.0
          %1341 = vmatpush.msra.mxu0 0.0
          %1342 = vmatpush.msra.mxu0 0.0
          %1343 = vmatpush.msra.mxu0 0.0
          %1344 = vmatpush.msra.mxu0 0.0
          %1345 = vmatpush.msra.mxu0 0.0
          %1346 = vmatpush.msra.mxu0 0.0
          %1347 = vmatpush.msra.mxu0 0.0
          %v1348 = vand.u32 %v1257, 4294901760
          %v1349 = vsub.f32 %v1257, %v1348
          %1350 = vmatpush.msra.mxu0 %v1349
          %v1351 = vand.u32 %v1256, 4294901760
          %v1352 = vsub.f32 %v1256, %v1351
          %1353 = vmatpush.msra.mxu0 %v1352
          %v1354 = vand.u32 %v1259, 4294901760
          %v1355 = vsub.f32 %v1259, %v1354
          %1356 = vmatmul.f32.gmra.mxu0 %v1355
          %v1357 = vpop.f32.mrf.mxu0
          %v1358 = vadd.f32 %v1328, %v1357
          %v1359 = vand.u32 %v1262, 4294901760
          %v1360 = vsub.f32 %v1262, %v1359
          %1361 = vmatmul.f32.gmra.mxu0 %v1360
          %v1362 = vpop.f32.mrf.mxu0
          %v1363 = vadd.f32 %v1332, %v1362
          %1364 = vdwg.mxu0
          %1365 = vmatpush.msra.mxu0 0.0
          %1366 = vmatpush.msra.mxu0 0.0
          %1367 = vmatpush.msra.mxu0 0.0
          %1368 = vmatpush.msra.mxu0 0.0
          %1369 = vmatpush.msra.mxu0 0.0
          %1370 = vmatpush.msra.mxu0 0.0
          %1371 = vmatpush.msra.mxu0 0.0
          %1372 = vmatpush.msra.mxu0 0.0
          %1373 = vmatpush.msra.mxu0 0.0
          %1374 = vmatpush.msra.mxu0 0.0
          %1375 = vmatpush.msra.mxu0 0.0
          %1376 = vmatpush.msra.mxu0 0.0
          %1377 = vmatpush.msra.mxu0 0.0
          %1378 = vmatpush.msra.mxu0 0.0
          %v1379 = vand.u32 %v1257, 4294901760
          %1380 = vmatpush.msra.mxu0 %v1379
          %v1381 = vand.u32 %v1256, 4294901760
          %1382 = vmatpush.msra.mxu0 %v1381
          %v1383 = vand.u32 %v1259, 4294901760
          %v1384 = vsub.f32 %v1259, %v1383
          %v1385 = vand.u32 %v1384, 4294901760
          %1386 = vmatmul.f32.gmra.mxu0 %v1385
          %v1387 = vpop.f32.mrf.mxu0
          %v1388 = vadd.f32 %v1358, %v1387
          %v1389 = vand.u32 %v1262, 4294901760
          %v1390 = vsub.f32 %v1262, %v1389
          %v1391 = vand.u32 %v1390, 4294901760
          %1392 = vmatmul.f32.gmra.mxu0 %v1391
          %v1393 = vpop.f32.mrf.mxu0
          %v1394 = vadd.f32 %v1363, %v1393
          %1395 = vdwg.mxu0
          %1396 = vmatpush.msra.mxu0 0.0
          %1397 = vmatpush.msra.mxu0 0.0
          %1398 = vmatpush.msra.mxu0 0.0
          %1399 = vmatpush.msra.mxu0 0.0
          %1400 = vmatpush.msra.mxu0 0.0
          %1401 = vmatpush.msra.mxu0 0.0
          %1402 = vmatpush.msra.mxu0 0.0
          %1403 = vmatpush.msra.mxu0 0.0
          %1404 = vmatpush.msra.mxu0 0.0
          %1405 = vmatpush.msra.mxu0 0.0
          %1406 = vmatpush.msra.mxu0 0.0
          %1407 = vmatpush.msra.mxu0 0.0
          %1408 = vmatpush.msra.mxu0 0.0
          %1409 = vmatpush.msra.mxu0 0.0
          %v1410 = vand.u32 %v1257, 4294901760
          %v1411 = vsub.f32 %v1257, %v1410
          %v1412 = vand.u32 %v1411, 4294901760
          %1413 = vmatpush.msra.mxu0 %v1412
          %v1414 = vand.u32 %v1256, 4294901760
          %v1415 = vsub.f32 %v1256, %v1414
          %v1416 = vand.u32 %v1415, 4294901760
          %1417 = vmatpush.msra.mxu0 %v1416
          %v1418 = vand.u32 %v1259, 4294901760
          %1419 = vmatmul.f32.gmra.mxu0 %v1418
          %v1420 = vpop.f32.mrf.mxu0
          %v1421 = vadd.f32 %v1388, %v1420
          %v1422 = vand.u32 %v1262, 4294901760
          %1423 = vmatmul.f32.gmra.mxu0 %v1422
          %v1424 = vpop.f32.mrf.mxu0
          %v1425 = vadd.f32 %v1394, %v1424
          %1426 = vdwg.mxu0
          %1427 = vmatpush.msra.mxu0 0.0
          %1428 = vmatpush.msra.mxu0 0.0
          %1429 = vmatpush.msra.mxu0 0.0
          %1430 = vmatpush.msra.mxu0 0.0
          %1431 = vmatpush.msra.mxu0 0.0
          %1432 = vmatpush.msra.mxu0 0.0
          %1433 = vmatpush.msra.mxu0 0.0
          %1434 = vmatpush.msra.mxu0 0.0
          %1435 = vmatpush.msra.mxu0 0.0
          %1436 = vmatpush.msra.mxu0 0.0
          %1437 = vmatpush.msra.mxu0 0.0
          %1438 = vmatpush.msra.mxu0 0.0
          %1439 = vmatpush.msra.mxu0 0.0
          %1440 = vmatpush.msra.mxu0 0.0
          %v1441 = vand.u32 %v1257, 4294901760
          %1442 = vmatpush.msra.mxu0 %v1441
          %v1443 = vand.u32 %v1256, 4294901760
          %1444 = vmatpush.msra.mxu0 %v1443
          %v1445 = vand.u32 %v1259, 4294901760
          %1446 = vmatmul.f32.gmra.mxu0 %v1445
          %v1447 = vpop.f32.mrf.mxu0
          %v1448 = vadd.f32 %v1421, %v1447
          %v1449 = vand.u32 %v1262, 4294901760
          %1450 = vmatmul.f32.gmra.mxu0 %v1449
          %v1451 = vpop.f32.mrf.mxu0
          %v1452 = vadd.f32 %v1425, %v1451
          %1453 = vdwg.mxu0
          %v1454 = vadd.f32 %v1251, %v1448
          %v1455 = vadd.f32 %v1252, %v1452
          %v1456 = vld [vmem:[#allocation2 + $0xb] sm:$0xff]
          %v1457 = vld [vmem:[#allocation2 + $0x13] sm:$0xff]
          %s1458 = scalar_lea.vmem [#allocation3], 96
          %v1459 = vld [vmem:[%s1458] sm:$0xff]
          %v1460 = vld [vmem:[%s1458 + $0x8] sm:$0xff]
          %v1462 = vsel %vm207, %v1456, 0
          %v1465 = vsel %vm207, %v1457, 0
          %1467 = vmatpush.msra.mxu0 0.0
          %1468 = vmatpush.msra.mxu0 0.0
          %1469 = vmatpush.msra.mxu0 0.0
          %1470 = vmatpush.msra.mxu0 0.0
          %1471 = vmatpush.msra.mxu0 0.0
          %1472 = vmatpush.msra.mxu0 0.0
          %1473 = vmatpush.msra.mxu0 0.0
          %1474 = vmatpush.msra.mxu0 0.0
          %1475 = vmatpush.msra.mxu0 0.0
          %1476 = vmatpush.msra.mxu0 0.0
          %1477 = vmatpush.msra.mxu0 0.0
          %1478 = vmatpush.msra.mxu0 0.0
          %1479 = vmatpush.msra.mxu0 0.0
          %1480 = vmatpush.msra.mxu0 0.0
          %v1481 = vand.u32 %v1460, 4294901760
          %1482 = vmatpush.msra.mxu0 %v1481
          %v1483 = vand.u32 %v1459, 4294901760
          %1484 = vmatpush.msra.mxu0 %v1483
          %v1485 = vand.u32 %v1462, 4294901760
          %v1486 = vsub.f32 %v1462, %v1485
          %v1487 = vand.u32 %v1486, 4294901760
          %v1488 = vsub.f32 %v1486, %v1487
          %v1489 = vand.u32 %v1488, 4294901760
          %1490 = vmatmul.f32.gmra.mxu0 %v1489
          %v1491 = vpop.f32.mrf.mxu0
          %v1492 = vadd.f32 0.0, %v1491
          %v1493 = vand.u32 %v1465, 4294901760
          %v1494 = vsub.f32 %v1465, %v1493
          %v1495 = vand.u32 %v1494, 4294901760
          %v1496 = vsub.f32 %v1494, %v1495
          %v1497 = vand.u32 %v1496, 4294901760
          %1498 = vmatmul.f32.gmra.mxu0 %v1497
          %v1499 = vpop.f32.mrf.mxu0
          %v1500 = vadd.f32 0.0, %v1499
          %1501 = vdwg.mxu0
          %1502 = vmatpush.msra.mxu0 0.0
          %1503 = vmatpush.msra.mxu0 0.0
          %1504 = vmatpush.msra.mxu0 0.0
          %1505 = vmatpush.msra.mxu0 0.0
          %1506 = vmatpush.msra.mxu0 0.0
          %1507 = vmatpush.msra.mxu0 0.0
          %1508 = vmatpush.msra.mxu0 0.0
          %1509 = vmatpush.msra.mxu0 0.0
          %1510 = vmatpush.msra.mxu0 0.0
          %1511 = vmatpush.msra.mxu0 0.0
          %1512 = vmatpush.msra.mxu0 0.0
          %1513 = vmatpush.msra.mxu0 0.0
          %1514 = vmatpush.msra.mxu0 0.0
          %1515 = vmatpush.msra.mxu0 0.0
          %v1516 = vand.u32 %v1460, 4294901760
          %v1517 = vsub.f32 %v1460, %v1516
          %v1518 = vand.u32 %v1517, 4294901760
          %v1519 = vsub.f32 %v1517, %v1518
          %v1520 = vand.u32 %v1519, 4294901760
          %1521 = vmatpush.msra.mxu0 %v1520
          %v1522 = vand.u32 %v1459, 4294901760
          %v1523 = vsub.f32 %v1459, %v1522
          %v1524 = vand.u32 %v1523, 4294901760
          %v1525 = vsub.f32 %v1523, %v1524
          %v1526 = vand.u32 %v1525, 4294901760
          %1527 = vmatpush.msra.mxu0 %v1526
          %v1528 = vand.u32 %v1462, 4294901760
          %1529 = vmatmul.f32.gmra.mxu0 %v1528
          %v1530 = vpop.f32.mrf.mxu0
          %v1531 = vadd.f32 %v1492, %v1530
          %v1532 = vand.u32 %v1465, 4294901760
          %1533 = vmatmul.f32.gmra.mxu0 %v1532
          %v1534 = vpop.f32.mrf.mxu0
          %v1535 = vadd.f32 %v1500, %v1534
          %1536 = vdwg.mxu0
          %1537 = vmatpush.msra.mxu0 0.0
          %1538 = vmatpush.msra.mxu0 0.0
          %1539 = vmatpush.msra.mxu0 0.0
          %1540 = vmatpush.msra.mxu0 0.0
          %1541 = vmatpush.msra.mxu0 0.0
          %1542 = vmatpush.msra.mxu0 0.0
          %1543 = vmatpush.msra.mxu0 0.0
          %1544 = vmatpush.msra.mxu0 0.0
          %1545 = vmatpush.msra.mxu0 0.0
          %1546 = vmatpush.msra.mxu0 0.0
          %1547 = vmatpush.msra.mxu0 0.0
          %1548 = vmatpush.msra.mxu0 0.0
          %1549 = vmatpush.msra.mxu0 0.0
          %1550 = vmatpush.msra.mxu0 0.0
          %v1551 = vand.u32 %v1460, 4294901760
          %v1552 = vsub.f32 %v1460, %v1551
          %1553 = vmatpush.msra.mxu0 %v1552
          %v1554 = vand.u32 %v1459, 4294901760
          %v1555 = vsub.f32 %v1459, %v1554
          %1556 = vmatpush.msra.mxu0 %v1555
          %v1557 = vand.u32 %v1462, 4294901760
          %v1558 = vsub.f32 %v1462, %v1557
          %1559 = vmatmul.f32.gmra.mxu0 %v1558
          %v1560 = vpop.f32.mrf.mxu0
          %v1561 = vadd.f32 %v1531, %v1560
          %v1562 = vand.u32 %v1465, 4294901760
          %v1563 = vsub.f32 %v1465, %v1562
          %1564 = vmatmul.f32.gmra.mxu0 %v1563
          %v1565 = vpop.f32.mrf.mxu0
          %v1566 = vadd.f32 %v1535, %v1565
          %1567 = vdwg.mxu0
          %1568 = vmatpush.msra.mxu0 0.0
          %1569 = vmatpush.msra.mxu0 0.0
          %1570 = vmatpush.msra.mxu0 0.0
          %1571 = vmatpush.msra.mxu0 0.0
          %1572 = vmatpush.msra.mxu0 0.0
          %1573 = vmatpush.msra.mxu0 0.0
          %1574 = vmatpush.msra.mxu0 0.0
          %1575 = vmatpush.msra.mxu0 0.0
          %1576 = vmatpush.msra.mxu0 0.0
          %1577 = vmatpush.msra.mxu0 0.0
          %1578 = vmatpush.msra.mxu0 0.0
          %1579 = vmatpush.msra.mxu0 0.0
          %1580 = vmatpush.msra.mxu0 0.0
          %1581 = vmatpush.msra.mxu0 0.0
          %v1582 = vand.u32 %v1460, 4294901760
          %1583 = vmatpush.msra.mxu0 %v1582
          %v1584 = vand.u32 %v1459, 4294901760
          %1585 = vmatpush.msra.mxu0 %v1584
          %v1586 = vand.u32 %v1462, 4294901760
          %v1587 = vsub.f32 %v1462, %v1586
          %v1588 = vand.u32 %v1587, 4294901760
          %1589 = vmatmul.f32.gmra.mxu0 %v1588
          %v1590 = vpop.f32.mrf.mxu0
          %v1591 = vadd.f32 %v1561, %v1590
          %v1592 = vand.u32 %v1465, 4294901760
          %v1593 = vsub.f32 %v1465, %v1592
          %v1594 = vand.u32 %v1593, 4294901760
          %1595 = vmatmul.f32.gmra.mxu0 %v1594
          %v1596 = vpop.f32.mrf.mxu0
          %v1597 = vadd.f32 %v1566, %v1596
          %1598 = vdwg.mxu0
          %1599 = vmatpush.msra.mxu0 0.0
          %1600 = vmatpush.msra.mxu0 0.0
          %1601 = vmatpush.msra.mxu0 0.0
          %1602 = vmatpush.msra.mxu0 0.0
          %1603 = vmatpush.msra.mxu0 0.0
          %1604 = vmatpush.msra.mxu0 0.0
          %1605 = vmatpush.msra.mxu0 0.0
          %1606 = vmatpush.msra.mxu0 0.0
          %1607 = vmatpush.msra.mxu0 0.0
          %1608 = vmatpush.msra.mxu0 0.0
          %1609 = vmatpush.msra.mxu0 0.0
          %1610 = vmatpush.msra.mxu0 0.0
          %1611 = vmatpush.msra.mxu0 0.0
          %1612 = vmatpush.msra.mxu0 0.0
          %v1613 = vand.u32 %v1460, 4294901760
          %v1614 = vsub.f32 %v1460, %v1613
          %v1615 = vand.u32 %v1614, 4294901760
          %1616 = vmatpush.msra.mxu0 %v1615
          %v1617 = vand.u32 %v1459, 4294901760
          %v1618 = vsub.f32 %v1459, %v1617
          %v1619 = vand.u32 %v1618, 4294901760
          %1620 = vmatpush.msra.mxu0 %v1619
          %v1621 = vand.u32 %v1462, 4294901760
          %1622 = vmatmul.f32.gmra.mxu0 %v1621
          %v1623 = vpop.f32.mrf.mxu0
          %v1624 = vadd.f32 %v1591, %v1623
          %v1625 = vand.u32 %v1465, 4294901760
          %1626 = vmatmul.f32.gmra.mxu0 %v1625
          %v1627 = vpop.f32.mrf.mxu0
          %v1628 = vadd.f32 %v1597, %v1627
          %1629 = vdwg.mxu0
          %1630 = vmatpush.msra.mxu0 0.0
          %1631 = vmatpush.msra.mxu0 0.0
          %1632 = vmatpush.msra.mxu0 0.0
          %1633 = vmatpush.msra.mxu0 0.0
          %1634 = vmatpush.msra.mxu0 0.0
          %1635 = vmatpush.msra.mxu0 0.0
          %1636 = vmatpush.msra.mxu0 0.0
          %1637 = vmatpush.msra.mxu0 0.0
          %1638 = vmatpush.msra.mxu0 0.0
          %1639 = vmatpush.msra.mxu0 0.0
          %1640 = vmatpush.msra.mxu0 0.0
          %1641 = vmatpush.msra.mxu0 0.0
          %1642 = vmatpush.msra.mxu0 0.0
          %1643 = vmatpush.msra.mxu0 0.0
          %v1644 = vand.u32 %v1460, 4294901760
          %1645 = vmatpush.msra.mxu0 %v1644
          %v1646 = vand.u32 %v1459, 4294901760
          %1647 = vmatpush.msra.mxu0 %v1646
          %v1648 = vand.u32 %v1462, 4294901760
          %1649 = vmatmul.f32.gmra.mxu0 %v1648
          %v1650 = vpop.f32.mrf.mxu0
          %v1651 = vadd.f32 %v1624, %v1650
          %v1652 = vand.u32 %v1465, 4294901760
          %1653 = vmatmul.f32.gmra.mxu0 %v1652
          %v1654 = vpop.f32.mrf.mxu0
          %v1655 = vadd.f32 %v1628, %v1654
          %1656 = vdwg.mxu0
          %v1657 = vadd.f32 %v1454, %v1651
          %v1658 = vadd.f32 %v1455, %v1655
          %1659 = vst.msk [vmem:[%s197] sm:$0xff] %vm207, %v1657
          %1660 = vst.msk [vmem:[%s197 + $0x8] sm:$0xff] %vm207, %v1658
        $region48: #{tpu_custom_call.1} parent=27 // pred_fallthru
          _
        %s1661 = sand.u32 %s89, 1
        %s1662 = scalar_lea.sflag [#allocation5], %s1661
        %s1663 = sand.u32 %s89, 1
        %s1664 = smul.addr %s1663, 16
        %s1665 = scalar_lea.vmem [#allocation8], %s1664
        // Predicated region
        $region49: #{tpu_custom_call.1} parent=27 // pred_check
          %p1666 = pneg %p99
        $region50: #{tpu_custom_call.1} parent=27 // pred_check_branch
          %1668 = sbr.rel (%p1666) target = $region52
        $region51: #{tpu_custom_call.1} parent=27 // pred_region
          %1670 = vsyncadd %s1662, 0
          %s1671 = smul.addr %s24, 2
          %s1672 = smul.addr %s1671, 8
          %s1673 = scalar_lea.hbm %s2, %s1672
          %s1674 = sshll.u32 %s1665, 4
          %s1675 = int_to_ptr.vmem [resolvable:$true] %s1674
          %s1676 = sshll.u32 %s1673, 4
          %s1677 = int_to_ptr.hbm [resolvable:$true] %s1676
          %1682 = dma.vmem_to_hbm [thread:$0]  %s1675, 256, %s1677, %s1662, 128, 128, 8
        $region52: #{tpu_custom_call.1} parent=27 // pred_fallthru
          _
      $region28: #{tpu_custom_call.1} parent=5 // pred_fallthru
        _
      %p1683 = scmp.le.s32.totalorder 2, %s15
      // Predicated region
      $region53: #{tpu_custom_call.1} parent=5 // pred_check
        %p1684 = pneg %p1683
      $region54: #{tpu_custom_call.1} parent=5 // pred_check_branch
        %1686 = sbr.rel (%p1684) target = $region56
      $region55: #{tpu_custom_call.1} parent=5 // pred_region
        %s1687 = ssub.s32 %s15, 2
        // Predicated region
        $region57: #{tpu_custom_call.1} parent=55 // pred_check
          %p1688 = pneg %p105
        $region58: #{tpu_custom_call.1} parent=55 // pred_check_branch
          %1690 = sbr.rel (%p1688) target = $region60
        $region59: #{tpu_custom_call.1} parent=55 // pred_region
          %s1691 = sand.u32 %s90, 1
          %s1692 = scalar_lea.sflag [#allocation5], %s1691
          %s1693 = sand.u32 %s90, 1
          %s1694 = smul.addr %s1693, 16
          %s1695 = scalar_lea.vmem [#allocation8], %s1694
          %1697 = dma.done %s1692, 256
        $region60: #{tpu_custom_call.1} parent=55 // pred_fallthru
          _
      $region56: #{tpu_custom_call.1} parent=5 // pred_fallthru
        _
    $region6: #{tpu_custom_call.1} parent=1 // loop_footer
      %s19 = sadd.s32 1, %s15
    $region7: #{tpu_custom_call.1} parent=1 // loop_footer_branch
      %14 = sbr.rel target = $region3
    $region8: #{tpu_custom_call.1} parent=1 // loop_exit
      _
    %1698 = vsyncpa [#allocation4], 1
    %s1699 = scalar_lea.sflag [#allocation4], 1
    %1700 = vsyncpa %s1699, 1
    %1701 = vsyncpa [#allocation7], 1
    %s1702 = scalar_lea.sflag [#allocation7], 1
    %1703 = vsyncpa %s1702, 1
    %1704 = vsyncpa [#allocation5], 1
    %s1705 = scalar_lea.sflag [#allocation5], 1
    %1706 = vsyncpa %s1705, 1

</llo_original>
